<compile_context>
chip_gen: v7x
topology: tpu7x:2x2x1
jax: 0.10.0
libtpu: 0.0.40
codegen_flags: <defaults>
</compile_context>

<pallas_src>
import functools

import jax
import jax.numpy as jnp
import numpy as np
from jax.experimental import pallas as pl
from jax.experimental.pallas import tpu as pltpu

BIG = 1e10  # sentinel squared distance for "different batch" / padded points


def _round_up(x, m):
    return ((x + m - 1) // m) * m


def _interp3nn_kernel(new_xyz_ref, new_bidx_ref, xyz_t_ref, xyz_bidx_ref, feat_ref,
                      out_ref,
                      d1_s, d2_s, d3_s, i1_s, i2_s, i3_s, acc_s,
                      *, num_m_tiles):
    j = pl.program_id(1)
    tile_n = new_xyz_ref.shape[0]
    tile_m = xyz_t_ref.shape[1]

    # -------------------- phase 1: streaming 3-NN over M tiles --------------------
    @pl.when(j == 0)
    def _init_topk():
        d1_s[...] = jnp.full_like(d1_s, BIG)
        d2_s[...] = jnp.full_like(d2_s, BIG)
        d3_s[...] = jnp.full_like(d3_s, BIG)
        i1_s[...] = jnp.zeros_like(i1_s)
        i2_s[...] = jnp.zeros_like(i2_s)
        i3_s[...] = jnp.zeros_like(i3_s)

    @pl.when(j < num_m_tiles)
    def _phase1():
        off = j * tile_m
        q = new_xyz_ref[...].astype(jnp.float32)           # (tile_n, 3)
        qb = new_bidx_ref[...]                             # (tile_n, 1) int32
        pt = xyz_t_ref[...].astype(jnp.float32)            # (3, tile_m)
        pb = xyz_bidx_ref[...]                             # (1, tile_m) int32

        # Squared pairwise distances on the VPU (f32, no cancellation).
        dx = q[:, 0:1] - pt[0:1, :]
        dy = q[:, 1:2] - pt[1:2, :]
        dz = q[:, 2:3] - pt[2:3, :]
        d2 = dx * dx + dy * dy + dz * dz                   # (tile_n, tile_m)
        d2 = jnp.where(qb == pb, d2, BIG)                  # batch mask (+ M padding)

        col = jax.lax.broadcasted_iota(jnp.int32, (tile_n, tile_m), 1)

        bd1, bd2, bd3 = d1_s[...], d2_s[...], d3_s[...]
        bi1, bi2, bi3 = i1_s[...], i2_s[...], i3_s[...]

        dmat = d2
        for _ in range(3):
            cd = jnp.min(dmat, axis=1, keepdims=True)                       # (tile_n,1)
            p = jnp.argmin(dmat, axis=1, keepdims=True).astype(jnp.int32)   # (tile_n,1)
            ci = off + p                                                    # global index
            dmat = jnp.where(col == p, BIG, dmat)                           # knock out
            # Insert (cd, ci) into the sorted running top-3. Strict '<' keeps the
            # earlier (lower global index) candidate on exact ties, matching the
            # reference's stable argsort / first-argmin behavior.
            lt1 = cd < bd1
            lt2 = cd < bd2
            lt3 = cd < bd3
            nd1 = jnp.where(lt1, cd, bd1)
            ni1 = jnp.where(lt1, ci, bi1)
            nd2 = jnp.where(lt1, bd1, jnp.where(lt2, cd, bd2))
            ni2 = jnp.where(lt1, bi1, jnp.where(lt2, ci, bi2))
            nd3 = jnp.where(lt2, bd2, jnp.where(lt3, cd, bd3))
            ni3 = jnp.where(lt2, bi2, jnp.where(lt3, ci, bi3))
            bd1, bd2, bd3 = nd1, nd2, nd3
            bi1, bi2, bi3 = ni1, ni2, ni3

        d1_s[...], d2_s[...], d3_s[...] = bd1, bd2, bd3
        i1_s[...], i2_s[...], i3_s[...] = bi1, bi2, bi3

    # ---------------- phase 2: weighted gather as tiled one-hot matmul ----------------
    @pl.when(j == num_m_tiles)
    def _init_acc():
        acc_s[...] = jnp.zeros_like(acc_s)

    @pl.when(j >= num_m_tiles)
    def _phase2():
        k = j - num_m_tiles
        off = k * tile_m

        # three_nn returns sqrt distances; weight = recip / sum(recip). All f32.
        r1 = 1.0 / (jnp.sqrt(d1_s[...]) + 1e-8)
        r2 = 1.0 / (jnp.sqrt(d2_s[...]) + 1e-8)
        r3 = 1.0 / (jnp.sqrt(d3_s[...]) + 1e-8)
        inv_norm = 1.0 / (r1 + r2 + r3)
        w1 = r1 * inv_norm
        w2 = r2 * inv_norm
        w3 = r3 * inv_norm

        col = off + jax.lax.broadcasted_iota(jnp.int32, (tile_n, tile_m), 1)
        w_tile = (jnp.where(col == i1_s[...], w1, 0.0)
                  + jnp.where(col == i2_s[...], w2, 0.0)
                  + jnp.where(col == i3_s[...], w3, 0.0))      # (tile_n, tile_m) f32
        acc_s[...] += jnp.dot(w_tile.astype(jnp.bfloat16), feat_ref[...],
                              preferred_element_type=jnp.float32)

    @pl.when(j == 2 * num_m_tiles - 1)
    def _finalize():
        out_ref[...] = acc_s[...].astype(out_ref.dtype)


def interpolate_3nn(xyz, xyz_batch_cnt, new_xyz, new_xyz_batch_cnt, features,
                    tile_n=128, tile_m=512):
    """Pallas implementation of Interpolate3NN.forward (three_nn + three_interpolate)."""
    M = xyz.shape[0]
    N = new_xyz.shape[0]
    C = features.shape[1]
    B = xyz_batch_cnt.shape[0]

    # Glue: per-point batch ids from the batch-count vectors (plain JAX).
    xyz_bidx = jnp.repeat(jnp.arange(B, dtype=jnp.int32), xyz_batch_cnt,
                          total_repeat_length=M)
    new_bidx = jnp.repeat(jnp.arange(B, dtype=jnp.int32), new_xyz_batch_cnt,
                          total_repeat_length=N)

    # Clamp tiles to the problem size while keeping TPU-friendly multiples.
    tile_n = max(8, min(tile_n, _round_up(N, 8)))
    tile_m = max(128, min(tile_m, _round_up(M, 128)))
    N_pad = _round_up(N, tile_n)
    M_pad = _round_up(M, tile_m)
    C_pad = _round_up(C, 128)            # lane-dense output stores
    num_n_tiles = N_pad // tile_n
    num_m_tiles = M_pad // tile_m

    new_xyz_p = jnp.pad(new_xyz.astype(jnp.float32), ((0, N_pad - N), (0, 0)))
    new_bidx_p = jnp.pad(new_bidx.reshape(N, 1), ((0, N_pad - N), (0, 0)),
                         constant_values=-1)
    xyz_t_p = jnp.pad(xyz.astype(jnp.float32).T, ((0, 0), (0, M_pad - M)))
    xyz_bidx_p = jnp.pad(xyz_bidx.reshape(1, M), ((0, 0), (0, M_pad - M)),
                         constant_values=-2)
    feat_p = jnp.pad(features, ((0, M_pad - M), (0, C_pad - C))).astype(jnp.bfloat16)

    kernel = functools.partial(_interp3nn_kernel, num_m_tiles=num_m_tiles)

    out = pl.pallas_call(
        kernel,
        out_shape=jax.ShapeDtypeStruct((N_pad, C_pad), features.dtype),
        grid_spec=pltpu.PrefetchScalarGridSpec(
            num_scalar_prefetch=0,
            grid=(num_n_tiles, 2 * num_m_tiles),
            in_specs=[
                # Query tiles: constant along j -> fetched once per query tile.
                pl.BlockSpec((tile_n, 3), lambda i, j: (i, 0)),
                pl.BlockSpec((tile_n, 1), lambda i, j: (i, 0)),
                # Known points (transposed) + batch ids: walked in phase 1,
                # block index held in phase 2 (no redundant re-fetch).
                pl.BlockSpec((3, tile_m),
                             lambda i, j: (0, jnp.minimum(j, num_m_tiles - 1))),
                pl.BlockSpec((1, tile_m),
                             lambda i, j: (0, jnp.minimum(j, num_m_tiles - 1))),
                # Features (bf16): held at block 0 in phase 1, walked in phase 2.
                pl.BlockSpec((tile_m, C_pad),
                             lambda i, j: (jnp.maximum(j - num_m_tiles, 0), 0)),
            ],
            out_specs=pl.BlockSpec((tile_n, C_pad), lambda i, j: (i, 0)),
            scratch_shapes=[
                pltpu.VMEM((tile_n, 1), jnp.float32),   # d1
                pltpu.VMEM((tile_n, 1), jnp.float32),   # d2
                pltpu.VMEM((tile_n, 1), jnp.float32),   # d3
                pltpu.VMEM((tile_n, 1), jnp.int32),     # i1
                pltpu.VMEM((tile_n, 1), jnp.int32),     # i2
                pltpu.VMEM((tile_n, 1), jnp.int32),     # i3
                pltpu.VMEM((tile_n, C_pad), jnp.float32),  # output accumulator
            ],
        ),
        compiler_params=pltpu.CompilerParams(
            dimension_semantics=("parallel", "arbitrary"),
            vmem_limit_bytes=32 * 1024 * 1024,
        ),
    )(new_xyz_p, new_bidx_p, xyz_t_p, xyz_bidx_p, feat_p)

    return out[:N, :C]


def _reference(xyz, xyz_batch_cnt, new_xyz, new_xyz_batch_cnt, features):
    """Pure-JAX f32 reference mirroring three_nn + three_interpolate semantics."""
    M = xyz.shape[0]
    N = new_xyz.shape[0]
    B = xyz_batch_cnt.shape[0]
    xyz_bidx = jnp.repeat(jnp.arange(B), xyz_batch_cnt, total_repeat_length=M)
    new_bidx = jnp.repeat(jnp.arange(B), new_xyz_batch_cnt, total_repeat_length=N)
    d2 = jnp.sum((new_xyz[:, None, :] - xyz[None, :, :]) ** 2, axis=-1)
    d2 = jnp.where(new_bidx[:, None] == xyz_bidx[None, :], d2, BIG)
    idx = jnp.argsort(d2, axis=1)[:, :3]
    dist = jnp.sqrt(jnp.take_along_axis(d2, idx, axis=1))
    recip = 1.0 / (dist + 1e-8)
    weight = recip / jnp.sum(recip, axis=1, keepdims=True)
    gathered = features[idx]                                   # (N, 3, C)
    return jnp.sum(weight[..., None] * gathered, axis=1)


if __name__ == "__main__":
    root = jax.random.PRNGKey(0)

    cases = [
        # (B, M_per_batch, N_per_batch, C, tile_n, tile_m)
        (2, 24, 16, 32, 128, 512),   # single tile in both axes
        (2, 160, 24, 32, 16, 128),   # multiple query tiles + streamed M tiles (both phases)
    ]
    for ci, (B, M_per, N_per, C, tile_n, tile_m) in enumerate(cases):
        k1, k2, k3 = jax.random.split(jax.random.fold_in(root, ci), 3)
        M, N = B * M_per, B * N_per

        xyz = jax.random.uniform(k1, (M, 3), dtype=jnp.float32) * 10.0
        new_xyz = jax.random.uniform(k2, (N, 3), dtype=jnp.float32) * 10.0
        features = jax.random.normal(k3, (M, C), dtype=jnp.float32)
        xyz_batch_cnt = jnp.full((B,), M_per, dtype=jnp.int32)
        new_xyz_batch_cnt = jnp.full((B,), N_per, dtype=jnp.int32)

        out = interpolate_3nn(xyz, xyz_batch_cnt, new_xyz, new_xyz_batch_cnt,
                              features, tile_n=tile_n, tile_m=tile_m)
        out = jax.block_until_ready(out)

        ref = _reference(xyz, xyz_batch_cnt, new_xyz, new_xyz_batch_cnt, features)
        # The interpolation matmul runs in bf16 (weights sum to 1, distances/weights
        # stay f32), so compare against the exact f32 reference with a matching tolerance.
        np.testing.assert_allclose(np.asarray(out), np.asarray(ref),
                                   rtol=2e-2, atol=5e-2)

    print("KERNEL_OK")
</pallas_src>

<mosaic_0001>
module attributes {stable_mosaic.version = 11 : i64} {
  func.func @_interp3nn_kernel(%arg0: i32, %arg1: i32, %arg2: memref<32x3xf32, #tpu.memory_space<vmem>>, %arg3: memref<32x1xi32, #tpu.memory_space<vmem>>, %arg4: memref<3x128xf32, #tpu.memory_space<vmem>>, %arg5: memref<1x128xi32, #tpu.memory_space<vmem>>, %arg6: memref<128x128xbf16, #tpu.memory_space<vmem>>, %arg7: memref<32x128xf32, #tpu.memory_space<vmem>>, %arg8: memref<32x1xf32, #tpu.memory_space<vmem>>, %arg9: memref<32x1xf32, #tpu.memory_space<vmem>>, %arg10: memref<32x1xf32, #tpu.memory_space<vmem>>, %arg11: memref<32x1xi32, #tpu.memory_space<vmem>>, %arg12: memref<32x1xi32, #tpu.memory_space<vmem>>, %arg13: memref<32x1xi32, #tpu.memory_space<vmem>>, %arg14: memref<32x128xf32, #tpu.memory_space<vmem>>) attributes {dimension_semantics = [#tpu.dimension_semantics<parallel>, #tpu.dimension_semantics<arbitrary>], iteration_bounds = array<i64: 1, 2>, scalar_prefetch = 0 : i64, scratch_operands = 7 : i64, tpu.core_type = #tpu.core_type<tc>, window_params = [{transform_indices = @transform_0, window_bounds = array<i64: 32, 3>}, {transform_indices = @transform_1, window_bounds = array<i64: 32, 1>}, {transform_indices = @transform_2, window_bounds = array<i64: 3, 128>}, {transform_indices = @transform_3, window_bounds = array<i64: 1, 128>}, {transform_indices = @transform_4, window_bounds = array<i64: 128, 128>}, {transform_indices = @transform_5, window_bounds = array<i64: 32, 128>}]} {
    %c0_i32 = arith.constant 0 : i32
    %0 = arith.cmpi eq, %arg1, %c0_i32 : i32
    %1 = arith.extui %0 : i1 to i32
    %c0_i32_0 = arith.constant 0 : i32
    %2 = arith.cmpi ne, %1, %c0_i32_0 : i32
    scf.if %2 {
      %cst = arith.constant 1.000000e+10 : f32
      %15 = vector.broadcast %cst : f32 to vector<32x1xf32>
      %c0 = arith.constant 0 : index
      %c0_8 = arith.constant 0 : index
      %16 = vector.load %arg8[%c0, %c0_8] : memref<32x1xf32, #tpu.memory_space<vmem>>, vector<32x1xf32>
      tpu.vector_store %arg8[%c0, %c0_8], %15 {strides = array<i32>} : memref<32x1xf32, #tpu.memory_space<vmem>>, vector<32x1xf32>,
      %cst_9 = arith.constant 1.000000e+10 : f32
      %17 = vector.broadcast %cst_9 : f32 to vector<32x1xf32>
      %c0_10 = arith.constant 0 : index
      %c0_11 = arith.constant 0 : index
      %18 = vector.load %arg9[%c0_10, %c0_11] : memref<32x1xf32, #tpu.memory_space<vmem>>, vector<32x1xf32>
      tpu.vector_store %arg9[%c0_10, %c0_11], %17 {strides = array<i32>} : memref<32x1xf32, #tpu.memory_space<vmem>>, vector<32x1xf32>,
      %cst_12 = arith.constant 1.000000e+10 : f32
      %19 = vector.broadcast %cst_12 : f32 to vector<32x1xf32>
      %c0_13 = arith.constant 0 : index
      %c0_14 = arith.constant 0 : index
      %20 = vector.load %arg10[%c0_13, %c0_14] : memref<32x1xf32, #tpu.memory_space<vmem>>, vector<32x1xf32>
      tpu.vector_store %arg10[%c0_13, %c0_14], %19 {strides = array<i32>} : memref<32x1xf32, #tpu.memory_space<vmem>>, vector<32x1xf32>,
      %c0_i32_15 = arith.constant 0 : i32
      %21 = vector.broadcast %c0_i32_15 : i32 to vector<32x1xi32>
      %c0_16 = arith.constant 0 : index
      %c0_17 = arith.constant 0 : index
      %22 = vector.load %arg11[%c0_16, %c0_17] : memref<32x1xi32, #tpu.memory_space<vmem>>, vector<32x1xi32>
      tpu.vector_store %arg11[%c0_16, %c0_17], %21 {strides = array<i32>} : memref<32x1xi32, #tpu.memory_space<vmem>>, vector<32x1xi32>,
      %c0_i32_18 = arith.constant 0 : i32
      %23 = vector.broadcast %c0_i32_18 : i32 to vector<32x1xi32>
      %c0_19 = arith.constant 0 : index
      %c0_20 = arith.constant 0 : index
      %24 = vector.load %arg12[%c0_19, %c0_20] : memref<32x1xi32, #tpu.memory_space<vmem>>, vector<32x1xi32>
      tpu.vector_store %arg12[%c0_19, %c0_20], %23 {strides = array<i32>} : memref<32x1xi32, #tpu.memory_space<vmem>>, vector<32x1xi32>,
      %c0_i32_21 = arith.constant 0 : i32
      %25 = vector.broadcast %c0_i32_21 : i32 to vector<32x1xi32>
      %c0_22 = arith.constant 0 : index
      %c0_23 = arith.constant 0 : index
      %26 = vector.load %arg13[%c0_22, %c0_23] : memref<32x1xi32, #tpu.memory_space<vmem>>, vector<32x1xi32>
      tpu.vector_store %arg13[%c0_22, %c0_23], %25 {strides = array<i32>} : memref<32x1xi32, #tpu.memory_space<vmem>>, vector<32x1xi32>,
    } else {
    }
    %c1_i32 = arith.constant 1 : i32
    %3 = arith.cmpi slt, %arg1, %c1_i32 : i32
    %4 = arith.extui %3 : i1 to i32
    %c0_i32_1 = arith.constant 0 : i32
    %5 = arith.cmpi ne, %4, %c0_i32_1 : i32
    scf.if %5 {
      %c128_i32 = arith.constant 128 : i32
      %15 = arith.muli %arg1, %c128_i32 : i32
      %c0 = arith.constant 0 : index
      %c0_8 = arith.constant 0 : index
      %16 = vector.load %arg2[%c0, %c0_8] : memref<32x3xf32, #tpu.memory_space<vmem>>, vector<32x3xf32>
      %c0_9 = arith.constant 0 : index
      %c0_10 = arith.constant 0 : index
      %17 = vector.load %arg3[%c0_9, %c0_10] : memref<32x1xi32, #tpu.memory_space<vmem>>, vector<32x1xi32>
      %c0_11 = arith.constant 0 : index
      %c0_12 = arith.constant 0 : index
      %18 = vector.load %arg4[%c0_11, %c0_12] : memref<3x128xf32, #tpu.memory_space<vmem>>, vector<3x128xf32>
      %c0_13 = arith.constant 0 : index
      %c0_14 = arith.constant 0 : index
      %19 = vector.load %arg5[%c0_13, %c0_14] : memref<1x128xi32, #tpu.memory_space<vmem>>, vector<1x128xi32>
      %20 = vector.extract_strided_slice %16 {offsets = [0, 0], sizes = [32, 1], strides = [1, 1]} : vector<32x3xf32> to vector<32x1xf32>
      %21 = vector.extract_strided_slice %18 {offsets = [0, 0], sizes = [1, 128], strides = [1, 1]} : vector<3x128xf32> to vector<1x128xf32>
      %22 = vector.broadcast %20 : vector<32x1xf32> to vector<32x128xf32>
      %23 = vector.broadcast %21 : vector<1x128xf32> to vector<32x128xf32>
      %24 = arith.subf %22, %23 : vector<32x128xf32>
      %25 = vector.extract_strided_slice %16 {offsets = [0, 1], sizes = [32, 1], strides = [1, 1]} : vector<32x3xf32> to vector<32x1xf32>
      %26 = vector.extract_strided_slice %18 {offsets = [1, 0], sizes = [1, 128], strides = [1, 1]} : vector<3x128xf32> to vector<1x128xf32>
      %27 = vector.broadcast %25 : vector<32x1xf32> to vector<32x128xf32>
      %28 = vector.broadcast %26 : vector<1x128xf32> to vector<32x128xf32>
      %29 = arith.subf %27, %28 : vector<32x128xf32>
      %30 = vector.extract_strided_slice %16 {offsets = [0, 2], sizes = [32, 1], strides = [1, 1]} : vector<32x3xf32> to vector<32x1xf32>
      %31 = vector.extract_strided_slice %18 {offsets = [2, 0], sizes = [1, 128], strides = [1, 1]} : vector<3x128xf32> to vector<1x128xf32>
      %32 = vector.broadcast %30 : vector<32x1xf32> to vector<32x128xf32>
      %33 = vector.broadcast %31 : vector<1x128xf32> to vector<32x128xf32>
      %34 = arith.subf %32, %33 : vector<32x128xf32>
      %35 = arith.mulf %24, %24 : vector<32x128xf32>
      %36 = arith.mulf %29, %29 : vector<32x128xf32>
      %37 = arith.addf %35, %36 : vector<32x128xf32>
      %38 = arith.mulf %34, %34 : vector<32x128xf32>
      %39 = arith.addf %37, %38 : vector<32x128xf32>
      %40 = vector.broadcast %17 : vector<32x1xi32> to vector<32x128xi32>
      %41 = vector.broadcast %19 : vector<1x128xi32> to vector<32x128xi32>
      %42 = arith.cmpi eq, %40, %41 : vector<32x128xi32>
      %cst = arith.constant 1.000000e+10 : f32
      %43 = vector.broadcast %cst : f32 to vector<32x128xf32>
      %44 = arith.select %42, %39, %43 : vector<32x128xi1>, vector<32x128xf32>
      %45 = tpu.iota {dimensions = array<i32: 1>} : vector<32x128xi32>
      %c0_15 = arith.constant 0 : index
      %c0_16 = arith.constant 0 : index
      %46 = vector.load %arg8[%c0_15, %c0_16] : memref<32x1xf32, #tpu.memory_space<vmem>>, vector<32x1xf32>
      %c0_17 = arith.constant 0 : index
      %c0_18 = arith.constant 0 : index
      %47 = vector.load %arg9[%c0_17, %c0_18] : memref<32x1xf32, #tpu.memory_space<vmem>>, vector<32x1xf32>
      %c0_19 = arith.constant 0 : index
      %c0_20 = arith.constant 0 : index
      %48 = vector.load %arg10[%c0_19, %c0_20] : memref<32x1xf32, #tpu.memory_space<vmem>>, vector<32x1xf32>
      %c0_21 = arith.constant 0 : index
      %c0_22 = arith.constant 0 : index
      %49 = vector.load %arg11[%c0_21, %c0_22] : memref<32x1xi32, #tpu.memory_space<vmem>>, vector<32x1xi32>
      %c0_23 = arith.constant 0 : index
      %c0_24 = arith.constant 0 : index
      %50 = vector.load %arg12[%c0_23, %c0_24] : memref<32x1xi32, #tpu.memory_space<vmem>>, vector<32x1xi32>
      %c0_25 = arith.constant 0 : index
      %c0_26 = arith.constant 0 : index
      %51 = vector.load %arg13[%c0_25, %c0_26] : memref<32x1xi32, #tpu.memory_space<vmem>>, vector<32x1xi32>
      %cst_27 = arith.constant dense<0x7F800000> : vector<32xf32>
      %52 = vector.multi_reduction <minimumf>, %44, %cst_27 [1] : vector<32x128xf32> to vector<32xf32>
      %53 = vector.shape_cast %52 : vector<32xf32> to vector<32x1xf32>
      %54 = tpu.reduce_index %44 {axis = 1 : i32, kind = #tpu.reduction_kind<arg_min>} : vector<32x128xf32> -> vector<32xi32>
      %55 = vector.shape_cast %54 : vector<32xi32> to vector<32x1xi32>
      %56 = vector.broadcast %15 : i32 to vector<32x1xi32>
      %57 = arith.addi %56, %55 : vector<32x1xi32>
      %58 = vector.broadcast %55 : vector<32x1xi32> to vector<32x128xi32>
      %59 = arith.cmpi eq, %45, %58 : vector<32x128xi32>
      %cst_28 = arith.constant 1.000000e+10 : f32
      %60 = vector.broadcast %cst_28 : f32 to vector<32x128xf32>
      %61 = arith.select %59, %60, %44 : vector<32x128xi1>, vector<32x128xf32>
      %62 = arith.cmpf olt, %53, %46 : vector<32x1xf32>
      %63 = arith.cmpf olt, %53, %47 : vector<32x1xf32>
      %64 = arith.cmpf olt, %53, %48 : vector<32x1xf32>
      %65 = arith.select %62, %53, %46 : vector<32x1xi1>, vector<32x1xf32>
      %66 = arith.select %62, %57, %49 : vector<32x1xi1>, vector<32x1xi32>
      %67 = arith.select %63, %53, %47 : vector<32x1xi1>, vector<32x1xf32>
      %68 = arith.select %62, %46, %67 : vector<32x1xi1>, vector<32x1xf32>
      %69 = arith.select %63, %57, %50 : vector<32x1xi1>, vector<32x1xi32>
      %70 = arith.select %62, %49, %69 : vector<32x1xi1>, vector<32x1xi32>
      %71 = arith.select %64, %53, %48 : vector<32x1xi1>, vector<32x1xf32>
      %72 = arith.select %63, %47, %71 : vector<32x1xi1>, vector<32x1xf32>
      %73 = arith.select %64, %57, %51 : vector<32x1xi1>, vector<32x1xi32>
      %74 = arith.select %63, %50, %73 : vector<32x1xi1>, vector<32x1xi32>
      %cst_29 = arith.constant dense<0x7F800000> : vector<32xf32>
      %75 = vector.multi_reduction <minimumf>, %61, %cst_29 [1] : vector<32x128xf32> to vector<32xf32>
      %76 = vector.shape_cast %75 : vector<32xf32> to vector<32x1xf32>
      %77 = tpu.reduce_index %61 {axis = 1 : i32, kind = #tpu.reduction_kind<arg_min>} : vector<32x128xf32> -> vector<32xi32>
      %78 = vector.shape_cast %77 : vector<32xi32> to vector<32x1xi32>
      %79 = vector.broadcast %15 : i32 to vector<32x1xi32>
      %80 = arith.addi %79, %78 : vector<32x1xi32>
      %81 = vector.broadcast %78 : vector<32x1xi32> to vector<32x128xi32>
      %82 = arith.cmpi eq, %45, %81 : vector<32x128xi32>
      %cst_30 = arith.constant 1.000000e+10 : f32
      %83 = vector.broadcast %cst_30 : f32 to vector<32x128xf32>
      %84 = arith.select %82, %83, %61 : vector<32x128xi1>, vector<32x128xf32>
      %85 = arith.cmpf olt, %76, %65 : vector<32x1xf32>
      %86 = arith.cmpf olt, %76, %68 : vector<32x1xf32>
      %87 = arith.cmpf olt, %76, %72 : vector<32x1xf32>
      %88 = arith.select %85, %76, %65 : vector<32x1xi1>, vector<32x1xf32>
      %89 = arith.select %85, %80, %66 : vector<32x1xi1>, vector<32x1xi32>
      %90 = arith.select %86, %76, %68 : vector<32x1xi1>, vector<32x1xf32>
      %91 = arith.select %85, %65, %90 : vector<32x1xi1>, vector<32x1xf32>
      %92 = arith.select %86, %80, %70 : vector<32x1xi1>, vector<32x1xi32>
      %93 = arith.select %85, %66, %92 : vector<32x1xi1>, vector<32x1xi32>
      %94 = arith.select %87, %76, %72 : vector<32x1xi1>, vector<32x1xf32>
      %95 = arith.select %86, %68, %94 : vector<32x1xi1>, vector<32x1xf32>
      %96 = arith.select %87, %80, %74 : vector<32x1xi1>, vector<32x1xi32>
      %97 = arith.select %86, %70, %96 : vector<32x1xi1>, vector<32x1xi32>
      %cst_31 = arith.constant dense<0x7F800000> : vector<32xf32>
      %98 = vector.multi_reduction <minimumf>, %84, %cst_31 [1] : vector<32x128xf32> to vector<32xf32>
      %99 = vector.shape_cast %98 : vector<32xf32> to vector<32x1xf32>
      %100 = tpu.reduce_index %84 {axis = 1 : i32, kind = #tpu.reduction_kind<arg_min>} : vector<32x128xf32> -> vector<32xi32>
      %101 = vector.shape_cast %100 : vector<32xi32> to vector<32x1xi32>
      %102 = vector.broadcast %15 : i32 to vector<32x1xi32>
      %103 = arith.addi %102, %101 : vector<32x1xi32>
      %104 = arith.cmpf olt, %99, %88 : vector<32x1xf32>
      %105 = arith.cmpf olt, %99, %91 : vector<32x1xf32>
      %106 = arith.cmpf olt, %99, %95 : vector<32x1xf32>
      %107 = arith.select %104, %99, %88 : vector<32x1xi1>, vector<32x1xf32>
      %108 = arith.select %104, %103, %89 : vector<32x1xi1>, vector<32x1xi32>
      %109 = arith.select %105, %99, %91 : vector<32x1xi1>, vector<32x1xf32>
      %110 = arith.select %104, %88, %109 : vector<32x1xi1>, vector<32x1xf32>
      %111 = arith.select %105, %103, %93 : vector<32x1xi1>, vector<32x1xi32>
      %112 = arith.select %104, %89, %111 : vector<32x1xi1>, vector<32x1xi32>
      %113 = arith.select %106, %99, %95 : vector<32x1xi1>, vector<32x1xf32>
      %114 = arith.select %105, %91, %113 : vector<32x1xi1>, vector<32x1xf32>
      %115 = arith.select %106, %103, %97 : vector<32x1xi1>, vector<32x1xi32>
      %116 = arith.select %105, %93, %115 : vector<32x1xi1>, vector<32x1xi32>
      %c0_32 = arith.constant 0 : index
      %c0_33 = arith.constant 0 : index
      %117 = vector.load %arg8[%c0_32, %c0_33] : memref<32x1xf32, #tpu.memory_space<vmem>>, vector<32x1xf32>
      tpu.vector_store %arg8[%c0_32, %c0_33], %107 {strides = array<i32>} : memref<32x1xf32, #tpu.memory_space<vmem>>, vector<32x1xf32>,
      %c0_34 = arith.constant 0 : index
      %c0_35 = arith.constant 0 : index
      %118 = vector.load %arg9[%c0_34, %c0_35] : memref<32x1xf32, #tpu.memory_space<vmem>>, vector<32x1xf32>
      tpu.vector_store %arg9[%c0_34, %c0_35], %110 {strides = array<i32>} : memref<32x1xf32, #tpu.memory_space<vmem>>, vector<32x1xf32>,
      %c0_36 = arith.constant 0 : index
      %c0_37 = arith.constant 0 : index
      %119 = vector.load %arg10[%c0_36, %c0_37] : memref<32x1xf32, #tpu.memory_space<vmem>>, vector<32x1xf32>
      tpu.vector_store %arg10[%c0_36, %c0_37], %114 {strides = array<i32>} : memref<32x1xf32, #tpu.memory_space<vmem>>, vector<32x1xf32>,
      %c0_38 = arith.constant 0 : index
      %c0_39 = arith.constant 0 : index
      %120 = vector.load %arg11[%c0_38, %c0_39] : memref<32x1xi32, #tpu.memory_space<vmem>>, vector<32x1xi32>
      tpu.vector_store %arg11[%c0_38, %c0_39], %108 {strides = array<i32>} : memref<32x1xi32, #tpu.memory_space<vmem>>, vector<32x1xi32>,
      %c0_40 = arith.constant 0 : index
      %c0_41 = arith.constant 0 : index
      %121 = vector.load %arg12[%c0_40, %c0_41] : memref<32x1xi32, #tpu.memory_space<vmem>>, vector<32x1xi32>
      tpu.vector_store %arg12[%c0_40, %c0_41], %112 {strides = array<i32>} : memref<32x1xi32, #tpu.memory_space<vmem>>, vector<32x1xi32>,
      %c0_42 = arith.constant 0 : index
      %c0_43 = arith.constant 0 : index
      %122 = vector.load %arg13[%c0_42, %c0_43] : memref<32x1xi32, #tpu.memory_space<vmem>>, vector<32x1xi32>
      tpu.vector_store %arg13[%c0_42, %c0_43], %116 {strides = array<i32>} : memref<32x1xi32, #tpu.memory_space<vmem>>, vector<32x1xi32>,
    } else {
    }
    %c1_i32_2 = arith.constant 1 : i32
    %6 = arith.cmpi eq, %arg1, %c1_i32_2 : i32
    %7 = arith.extui %6 : i1 to i32
    %c0_i32_3 = arith.constant 0 : i32
    %8 = arith.cmpi ne, %7, %c0_i32_3 : i32
    scf.if %8 {
      %cst = arith.constant 0.000000e+00 : f32
      %15 = vector.broadcast %cst : f32 to vector<32x128xf32>
      %c0 = arith.constant 0 : index
      %c0_8 = arith.constant 0 : index
      %16 = vector.load %arg14[%c0, %c0_8] : memref<32x128xf32, #tpu.memory_space<vmem>>, vector<32x128xf32>
      tpu.vector_store %arg14[%c0, %c0_8], %15 {strides = array<i32>} : memref<32x128xf32, #tpu.memory_space<vmem>>, vector<32x128xf32>,
    } else {
    }
    %c1_i32_4 = arith.constant 1 : i32
    %9 = arith.cmpi sge, %arg1, %c1_i32_4 : i32
    %10 = arith.extui %9 : i1 to i32
    %c0_i32_5 = arith.constant 0 : i32
    %11 = arith.cmpi ne, %10, %c0_i32_5 : i32
    scf.if %11 {
      %c1_i32_8 = arith.constant 1 : i32
      %15 = arith.subi %arg1, %c1_i32_8 : i32
      %c128_i32 = arith.constant 128 : i32
      %16 = arith.muli %15, %c128_i32 : i32
      %c0 = arith.constant 0 : index
      %c0_9 = arith.constant 0 : index
      %17 = vector.load %arg8[%c0, %c0_9] : memref<32x1xf32, #tpu.memory_space<vmem>>, vector<32x1xf32>
      %18 = math.sqrt %17 : vector<32x1xf32>
      %cst = arith.constant 9.99999993E-9 : f32
      %19 = vector.broadcast %cst : f32 to vector<32x1xf32>
      %20 = arith.addf %18, %19 : vector<32x1xf32>
      %cst_10 = arith.constant 1.000000e+00 : f32
      %21 = vector.broadcast %cst_10 : f32 to vector<32x1xf32>
      %22 = arith.divf %21, %20 : vector<32x1xf32>
      %c0_11 = arith.constant 0 : index
      %c0_12 = arith.constant 0 : index
      %23 = vector.load %arg9[%c0_11, %c0_12] : memref<32x1xf32, #tpu.memory_space<vmem>>, vector<32x1xf32>
      %24 = math.sqrt %23 : vector<32x1xf32>
      %cst_13 = arith.constant 9.99999993E-9 : f32
      %25 = vector.broadcast %cst_13 : f32 to vector<32x1xf32>
      %26 = arith.addf %24, %25 : vector<32x1xf32>
      %cst_14 = arith.constant 1.000000e+00 : f32
      %27 = vector.broadcast %cst_14 : f32 to vector<32x1xf32>
      %28 = arith.divf %27, %26 : vector<32x1xf32>
      %c0_15 = arith.constant 0 : index
      %c0_16 = arith.constant 0 : index
      %29 = vector.load %arg10[%c0_15, %c0_16] : memref<32x1xf32, #tpu.memory_space<vmem>>, vector<32x1xf32>
      %30 = math.sqrt %29 : vector<32x1xf32>
      %cst_17 = arith.constant 9.99999993E-9 : f32
      %31 = vector.broadcast %cst_17 : f32 to vector<32x1xf32>
      %32 = arith.addf %30, %31 : vector<32x1xf32>
      %cst_18 = arith.constant 1.000000e+00 : f32
      %33 = vector.broadcast %cst_18 : f32 to vector<32x1xf32>
      %34 = arith.divf %33, %32 : vector<32x1xf32>
      %35 = arith.addf %22, %28 : vector<32x1xf32>
      %36 = arith.addf %35, %34 : vector<32x1xf32>
      %cst_19 = arith.constant 1.000000e+00 : f32
      %37 = vector.broadcast %cst_19 : f32 to vector<32x1xf32>
      %38 = arith.divf %37, %36 : vector<32x1xf32>
      %39 = arith.mulf %22, %38 : vector<32x1xf32>
      %40 = arith.mulf %28, %38 : vector<32x1xf32>
      %41 = arith.mulf %34, %38 : vector<32x1xf32>
      %42 = tpu.iota {dimensions = array<i32: 1>} : vector<32x128xi32>
      %43 = vector.broadcast %16 : i32 to vector<32x128xi32>
      %44 = arith.addi %43, %42 : vector<32x128xi32>
      %c0_20 = arith.constant 0 : index
      %c0_21 = arith.constant 0 : index
      %45 = vector.load %arg11[%c0_20, %c0_21] : memref<32x1xi32, #tpu.memory_space<vmem>>, vector<32x1xi32>
      %46 = vector.broadcast %45 : vector<32x1xi32> to vector<32x128xi32>
      %47 = arith.cmpi eq, %44, %46 : vector<32x128xi32>
      %cst_22 = arith.constant 0.000000e+00 : f32
      %48 = vector.shape_cast %39 : vector<32x1xf32> to vector<32x1xf32>
      %49 = vector.broadcast %48 : vector<32x1xf32> to vector<32x128xf32>
      %50 = vector.broadcast %cst_22 : f32 to vector<32x128xf32>
      %51 = arith.select %47, %49, %50 : vector<32x128xi1>, vector<32x128xf32>
      %c0_23 = arith.constant 0 : index
      %c0_24 = arith.constant 0 : index
      %52 = vector.load %arg12[%c0_23, %c0_24] : memref<32x1xi32, #tpu.memory_space<vmem>>, vector<32x1xi32>
      %53 = vector.broadcast %52 : vector<32x1xi32> to vector<32x128xi32>
      %54 = arith.cmpi eq, %44, %53 : vector<32x128xi32>
      %cst_25 = arith.constant 0.000000e+00 : f32
      %55 = vector.shape_cast %40 : vector<32x1xf32> to vector<32x1xf32>
      %56 = vector.broadcast %55 : vector<32x1xf32> to vector<32x128xf32>
      %57 = vector.broadcast %cst_25 : f32 to vector<32x128xf32>
      %58 = arith.select %54, %56, %57 : vector<32x128xi1>, vector<32x128xf32>
      %59 = arith.addf %51, %58 : vector<32x128xf32>
      %c0_26 = arith.constant 0 : index
      %c0_27 = arith.constant 0 : index
      %60 = vector.load %arg13[%c0_26, %c0_27] : memref<32x1xi32, #tpu.memory_space<vmem>>, vector<32x1xi32>
      %61 = vector.broadcast %60 : vector<32x1xi32> to vector<32x128xi32>
      %62 = arith.cmpi eq, %44, %61 : vector<32x128xi32>
      %cst_28 = arith.constant 0.000000e+00 : f32
      %63 = vector.shape_cast %41 : vector<32x1xf32> to vector<32x1xf32>
      %64 = vector.broadcast %63 : vector<32x1xf32> to vector<32x128xf32>
      %65 = vector.broadcast %cst_28 : f32 to vector<32x128xf32>
      %66 = arith.select %62, %64, %65 : vector<32x128xi1>, vector<32x128xf32>
      %67 = arith.addf %59, %66 : vector<32x128xf32>
      %c0_29 = arith.constant 0 : index
      %c0_30 = arith.constant 0 : index
      %68 = vector.load %arg14[%c0_29, %c0_30] : memref<32x128xf32, #tpu.memory_space<vmem>>, vector<32x128xf32>
      %69 = arith.truncf %67 : vector<32x128xf32> to vector<32x128xbf16>
      %c0_31 = arith.constant 0 : index
      %c0_32 = arith.constant 0 : index
      %70 = vector.load %arg6[%c0_31, %c0_32] : memref<128x128xbf16, #tpu.memory_space<vmem>>, vector<128x128xbf16>
      %cst_33 = arith.constant dense<0.000000e+00> : vector<32x128xf32>
      %71 = tpu.matmul %69, %70, %cst_33 {dimension_numbers = #tpu.dot_dimension_numbers<[1], [0], [0], [1], [0, 0, 1, 1], [], []>} : vector<32x128xbf16>, vector<128x128xbf16>, vector<32x128xf32> -> vector<32x128xf32>
      %72 = arith.addf %68, %71 : vector<32x128xf32>
      %c0_34 = arith.constant 0 : index
      %c0_35 = arith.constant 0 : index
      %73 = vector.load %arg14[%c0_34, %c0_35] : memref<32x128xf32, #tpu.memory_space<vmem>>, vector<32x128xf32>
      tpu.vector_store %arg14[%c0_34, %c0_35], %72 {strides = array<i32>} : memref<32x128xf32, #tpu.memory_space<vmem>>, vector<32x128xf32>,
    } else {
    }
    %c1_i32_6 = arith.constant 1 : i32
    %12 = arith.cmpi eq, %arg1, %c1_i32_6 : i32
    %13 = arith.extui %12 : i1 to i32
    %c0_i32_7 = arith.constant 0 : i32
    %14 = arith.cmpi ne, %13, %c0_i32_7 : i32
    scf.if %14 {
      %c0 = arith.constant 0 : index
      %c0_8 = arith.constant 0 : index
      %15 = vector.load %arg14[%c0, %c0_8] : memref<32x128xf32, #tpu.memory_space<vmem>>, vector<32x128xf32>
      %c0_9 = arith.constant 0 : index
      %c0_10 = arith.constant 0 : index
      %16 = vector.load %arg7[%c0_9, %c0_10] : memref<32x128xf32, #tpu.memory_space<vmem>>, vector<32x128xf32>
      tpu.vector_store %arg7[%c0_9, %c0_10], %15 {strides = array<i32>} : memref<32x128xf32, #tpu.memory_space<vmem>>, vector<32x128xf32>,
    } else {
    }
    return
  }
  func.func @transform_0(%arg0: i32, %arg1: i32) -> (i32, i32) {
    %c0_i32 = arith.constant 0 : i32
    %c0_i32_0 = arith.constant 0 : i32
    return %arg0, %c0_i32 : i32, i32
  }
  func.func @transform_1(%arg0: i32, %arg1: i32) -> (i32, i32) {
    %c0_i32 = arith.constant 0 : i32
    %c0_i32_0 = arith.constant 0 : i32
    return %arg0, %c0_i32 : i32, i32
  }
  func.func @transform_2(%arg0: i32, %arg1: i32) -> (i32, i32) {
    %c0_i32 = arith.constant 0 : i32
    %0 = arith.minsi %arg1, %c0_i32 : i32
    %c0_i32_0 = arith.constant 0 : i32
    %c0_i32_1 = arith.constant 0 : i32
    return %c0_i32_0, %0 : i32, i32
  }
  func.func @transform_3(%arg0: i32, %arg1: i32) -> (i32, i32) {
    %c0_i32 = arith.constant 0 : i32
    %0 = arith.minsi %arg1, %c0_i32 : i32
    %c0_i32_0 = arith.constant 0 : i32
    %c0_i32_1 = arith.constant 0 : i32
    return %c0_i32_0, %0 : i32, i32
  }
  func.func @transform_4(%arg0: i32, %arg1: i32) -> (i32, i32) {
    %c1_i32 = arith.constant 1 : i32
    %0 = arith.subi %arg1, %c1_i32 : i32
    %c0_i32 = arith.constant 0 : i32
    %1 = arith.maxsi %0, %c0_i32 : i32
    %c0_i32_0 = arith.constant 0 : i32
    %c0_i32_1 = arith.constant 0 : i32
    return %1, %c0_i32_0 : i32, i32
  }
  func.func @transform_5(%arg0: i32, %arg1: i32) -> (i32, i32) {
    %c0_i32 = arith.constant 0 : i32
    %c0_i32_0 = arith.constant 0 : i32
    return %arg0, %c0_i32 : i32, i32
  }
}

</mosaic_0001>

<llo_original>
// kernel: tpu_custom_call.1
$region0: #{tpu_custom_call.1}
  #allocation0 [shape = 'u32[]', space=smem, size = 0x4, offset = 0x4, fixed_abs, tag = 'smem constant byte address 0x4 - core index']
  #allocation1 [shape = 'u32[144,128]{1,0:T(1,128)}', space=vmem, size = 0x12000, scoped, tag = 'internal scratch']
  #allocation2 [shape = 'f32[32,1]{1,0:T(8,128)}', space=vmem, size = 0x4000, scoped, tag = 'scratch operand']
  #allocation3 [shape = 'f32[32,1]{1,0:T(8,128)}', space=vmem, size = 0x4000, scoped, tag = 'scratch operand']
  #allocation4 [shape = 'f32[32,1]{1,0:T(8,128)}', space=vmem, size = 0x4000, scoped, tag = 'scratch operand']
  #allocation5 [shape = 's32[32,1]{1,0:T(8,128)}', space=vmem, size = 0x4000, scoped, tag = 'scratch operand']
  #allocation6 [shape = 's32[32,1]{1,0:T(8,128)}', space=vmem, size = 0x4000, scoped, tag = 'scratch operand']
  #allocation7 [shape = 's32[32,1]{1,0:T(8,128)}', space=vmem, size = 0x4000, scoped, tag = 'scratch operand']
  #allocation8 [shape = 'f32[32,128]{1,0:T(8,128)}', space=vmem, size = 0x4000, scoped, tag = 'scratch operand']
  %s0 = inlined_call_operand.vmem [shape: f32[32,3], index: 0, kind: input, shape index: {}]
  %s1 = inlined_call_operand.vmem [shape: s32[32,1], index: 1, kind: input, shape index: {}]
  %s2 = inlined_call_operand.vmem [shape: f32[3,128], index: 2, kind: input, shape index: {}]
  %s3 = inlined_call_operand.vmem [shape: s32[1,128], index: 3, kind: input, shape index: {}]
  %s4 = inlined_call_operand.vmem [shape: bf16[128,128], index: 4, kind: input, shape index: {}]
  %s5 = inlined_call_operand.hbm [shape: f32[32,128], index: 5, kind: output, shape index: {}]
  %s6 = sld [smem:[#allocation0]]
  $region73: #{tpu_custom_call.1} parent=0
    _
  %s8 = ssub.s32 1, %s6
  %s9 = scalar_select 0, %s8, %s6
  $region1: #{tpu_custom_call.1} parent=0
    #allocation9 [shape = 'u8[16384]{0}', space=vmem, size = 0x4000, scoped, tag = 'output window, operand 0, single buffered']
    #allocation10 [shape = 's32[2]{0}', space=sflag, size = 0x8, scoped, tag = 'scoped memory for tpu_custom_call.1']
    %10 = vsyncpa [#allocation10], 0
    loop: start=0, step=1, limit=4
    $region2: #{tpu_custom_call.1} parent=1 // loop_pre_header
      _
    $region3: #{tpu_custom_call.1} parent=1 // loop_header
      %s12 = sphi 0, %s16
      %p13 = scmp.ge.s32.totalorder %s12, 4
      %s19 = sphi 0, %s31
      %s20 = sphi 0, %s27
      %s21 = sphi 0, %s19
      %s22 = sphi 0, %s20
      %s23 = sphi 0, %s21
      %s24 = sphi 0, %s22
      %s34 = sphi 0, %s36
      %s37 = sphi 0, %s34
      %s38 = sphi 0, %s37
      %s54 = sphi 0, %s38
      %s60 = sphi 0, %s62
      %s63 = sphi 0, %s60
      %s64 = sphi 0, %s63
      %s80 = sphi 0, %s64
      %s90 = sphi 0, %s92
      %s93 = sphi 0, %s90
      %s94 = sphi 0, %s93
      %s110 = sphi 0, %s94
      %s120 = sphi 0, %s122
      %s123 = sphi 0, %s120
      %s124 = sphi 0, %s123
      %s140 = sphi 0, %s124
      %s152 = sphi 0, %s154
      %s155 = sphi 0, %s152
      %s156 = sphi 0, %s155
      %s172 = sphi 0, %s156
      %s178 = sphi 0, %s180
      %s181 = sphi 0, %s178
      %s182 = sphi 0, %s181
      %s198 = sphi 0, %s182
    $region4: #{tpu_custom_call.1} parent=1 // loop_header_branch
      %15 = sbr.rel (%p13) target = $region8
    $region5: #{tpu_custom_call.1} parent=1 // loop_body
      %s17 = ssub.s32 %s12, 1
      %s18 = ssub.s32 %s12, 2
      %s25 = sadd.s32 1, %s20
      %p26 = scmp.ge.s32.totalorder %s25, 2
      %s27 = scalar_select %p26, 0, %s25
      %s28 = sadd.s32 1, %s19
      %s29 = scalar_select %p26, %s28, %s19
      %p30 = scmp.ge.s32.totalorder %s29, 1
      %s31 = scalar_select %p30, 0, %s29
      %s32 = ssub.s32 %s19, %s31
      %p33 = scmp.eq.s32.totalorder %s32, 0
      %s35 = sadd.s32 %s34, 1
      %s36 = scalar_select %p33, %s34, %s35
      %p39 = pneg %p33
      %p40 = scmp.eq.s32.totalorder %s12, 1
      %p41 = por %p39, %p40
      %p42 = scmp.ne.s32.totalorder %s34, %s37
      %p43 = scmp.eq.s32.totalorder %s12, 0
      %p44 = por %p42, %p43
      %p45 = scmp.ne.s32.totalorder %s34, %s37
      %p46 = scmp.eq.s32.totalorder %s17, 1
      %p47 = por %p45, %p46
      %p48 = scmp.ne.s32.totalorder %s37, %s38
      %p49 = scmp.eq.s32.totalorder %s17, 0
      %p50 = por %p48, %p49
      %p51 = scmp.ne.s32.totalorder %s37, %s38
      %p52 = scmp.eq.s32.totalorder %s18, 1
      %p53 = por %p51, %p52
      %p55 = scmp.ne.s32.totalorder %s38, %s54
      %p56 = scmp.eq.s32.totalorder %s18, 0
      %p57 = por %p55, %p56
      %s58 = ssub.s32 %s19, %s31
      %p59 = scmp.eq.s32.totalorder %s58, 0
      %s61 = sadd.s32 %s60, 1
      %s62 = scalar_select %p59, %s60, %s61
      %p65 = pneg %p59
      %p66 = scmp.eq.s32.totalorder %s12, 1
      %p67 = por %p65, %p66
      %p68 = scmp.ne.s32.totalorder %s60, %s63
      %p69 = scmp.eq.s32.totalorder %s12, 0
      %p70 = por %p68, %p69
      %p71 = scmp.ne.s32.totalorder %s60, %s63
      %p72 = scmp.eq.s32.totalorder %s17, 1
      %p73 = por %p71, %p72
      %p74 = scmp.ne.s32.totalorder %s63, %s64
      %p75 = scmp.eq.s32.totalorder %s17, 0
      %p76 = por %p74, %p75
      %p77 = scmp.ne.s32.totalorder %s63, %s64
      %p78 = scmp.eq.s32.totalorder %s18, 1
      %p79 = por %p77, %p78
      %p81 = scmp.ne.s32.totalorder %s64, %s80
      %p82 = scmp.eq.s32.totalorder %s18, 0
      %p83 = por %p81, %p82
      %p84 = scmp.lt.s32.totalorder %s20, 0
      %s85 = scalar_select %p84, %s20, 0
      %p86 = scmp.lt.s32.totalorder %s27, 0
      %s87 = scalar_select %p86, %s27, 0
      %s88 = ssub.s32 %s85, %s87
      %p89 = scmp.eq.s32.totalorder %s88, 0
      %s91 = sadd.s32 %s90, 1
      %s92 = scalar_select %p89, %s90, %s91
      %p95 = pneg %p89
      %p96 = scmp.eq.s32.totalorder %s12, 1
      %p97 = por %p95, %p96
      %p98 = scmp.ne.s32.totalorder %s90, %s93
      %p99 = scmp.eq.s32.totalorder %s12, 0
      %p100 = por %p98, %p99
      %p101 = scmp.ne.s32.totalorder %s90, %s93
      %p102 = scmp.eq.s32.totalorder %s17, 1
      %p103 = por %p101, %p102
      %p104 = scmp.ne.s32.totalorder %s93, %s94
      %p105 = scmp.eq.s32.totalorder %s17, 0
      %p106 = por %p104, %p105
      %p107 = scmp.ne.s32.totalorder %s93, %s94
      %p108 = scmp.eq.s32.totalorder %s18, 1
      %p109 = por %p107, %p108
      %p111 = scmp.ne.s32.totalorder %s94, %s110
      %p112 = scmp.eq.s32.totalorder %s18, 0
      %p113 = por %p111, %p112
      %p114 = scmp.lt.s32.totalorder %s20, 0
      %s115 = scalar_select %p114, %s20, 0
      %p116 = scmp.lt.s32.totalorder %s27, 0
      %s117 = scalar_select %p116, %s27, 0
      %s118 = ssub.s32 %s115, %s117
      %p119 = scmp.eq.s32.totalorder %s118, 0
      %s121 = sadd.s32 %s120, 1
      %s122 = scalar_select %p119, %s120, %s121
      %p125 = pneg %p119
      %p126 = scmp.eq.s32.totalorder %s12, 1
      %p127 = por %p125, %p126
      %p128 = scmp.ne.s32.totalorder %s120, %s123
      %p129 = scmp.eq.s32.totalorder %s12, 0
      %p130 = por %p128, %p129
      %p131 = scmp.ne.s32.totalorder %s120, %s123
      %p132 = scmp.eq.s32.totalorder %s17, 1
      %p133 = por %p131, %p132
      %p134 = scmp.ne.s32.totalorder %s123, %s124
      %p135 = scmp.eq.s32.totalorder %s17, 0
      %p136 = por %p134, %p135
      %p137 = scmp.ne.s32.totalorder %s123, %s124
      %p138 = scmp.eq.s32.totalorder %s18, 1
      %p139 = por %p137, %p138
      %p141 = scmp.ne.s32.totalorder %s124, %s140
      %p142 = scmp.eq.s32.totalorder %s18, 0
      %p143 = por %p141, %p142
      %s144 = ssub.s32 %s20, 1
      %p145 = scmp.gt.s32.totalorder %s144, 0
      %s146 = scalar_select %p145, %s144, 0
      %s147 = ssub.s32 %s27, 1
      %p148 = scmp.gt.s32.totalorder %s147, 0
      %s149 = scalar_select %p148, %s147, 0
      %s150 = ssub.s32 %s146, %s149
      %p151 = scmp.eq.s32.totalorder %s150, 0
      %s153 = sadd.s32 %s152, 1
      %s154 = scalar_select %p151, %s152, %s153
      %p157 = pneg %p151
      %p158 = scmp.eq.s32.totalorder %s12, 1
      %p159 = por %p157, %p158
      %p160 = scmp.ne.s32.totalorder %s152, %s155
      %p161 = scmp.eq.s32.totalorder %s12, 0
      %p162 = por %p160, %p161
      %p163 = scmp.ne.s32.totalorder %s152, %s155
      %p164 = scmp.eq.s32.totalorder %s17, 1
      %p165 = por %p163, %p164
      %p166 = scmp.ne.s32.totalorder %s155, %s156
      %p167 = scmp.eq.s32.totalorder %s17, 0
      %p168 = por %p166, %p167
      %p169 = scmp.ne.s32.totalorder %s155, %s156
      %p170 = scmp.eq.s32.totalorder %s18, 1
      %p171 = por %p169, %p170
      %p173 = scmp.ne.s32.totalorder %s156, %s172
      %p174 = scmp.eq.s32.totalorder %s18, 0
      %p175 = por %p173, %p174
      %s176 = ssub.s32 %s19, %s31
      %p177 = scmp.eq.s32.totalorder %s176, 0
      %s179 = sadd.s32 %s178, 1
      %s180 = scalar_select %p177, %s178, %s179
      %p183 = pneg %p177
      %p184 = scmp.eq.s32.totalorder %s12, 1
      %p185 = por %p183, %p184
      %p186 = scmp.ne.s32.totalorder %s178, %s181
      %p187 = scmp.eq.s32.totalorder %s12, 0
      %p188 = por %p186, %p187
      %p189 = scmp.ne.s32.totalorder %s178, %s181
      %p190 = scmp.eq.s32.totalorder %s17, 1
      %p191 = por %p189, %p190
      %p192 = scmp.ne.s32.totalorder %s181, %s182
      %p193 = scmp.eq.s32.totalorder %s17, 0
      %p194 = por %p192, %p193
      %p195 = scmp.ne.s32.totalorder %s181, %s182
      %p196 = scmp.eq.s32.totalorder %s18, 1
      %p197 = por %p195, %p196
      %p199 = scmp.ne.s32.totalorder %s182, %s198
      %p200 = scmp.eq.s32.totalorder %s18, 0
      %p201 = por %p199, %p200
      %p202 = scmp.le.s32.totalorder 1, %s12
      %p203 = scmp.lt.s32.totalorder %s12, 3
      %p204 = pnand %p202, %p203
      %p205 = pneg %p204
      // Predicated region
      $region9: #{tpu_custom_call.1} parent=5 // pred_check
        _
      $region10: #{tpu_custom_call.1} parent=5 // pred_check_branch
        %207 = sbr.rel (%p204) target = $region12
      $region11: #{tpu_custom_call.1} parent=5 // pred_region
        %s208 = ssub.s32 %s12, 1
        // Predicated region
        $region13: #{tpu_custom_call.1} parent=11 // pred_check
          %p209 = pneg %p50
        $region14: #{tpu_custom_call.1} parent=11 // pred_check_branch
          %211 = sbr.rel (%p209) target = $region16
        $region15: #{tpu_custom_call.1} parent=11 // pred_region
          %s212 = smul.u32 4, %s21
          %p213 = scmp.lt.s32.totalorder %s212, 3
          %s214 = scalar_select %p213, %s212, 3
          %s215 = smul.addr %s214, 8
          %s216 = scalar_lea.vmem %s0, %s215
          %s217 = smul.u32 4, %s21
        $region16: #{tpu_custom_call.1} parent=11 // pred_fallthru
          _
        // Predicated region
        $region17: #{tpu_custom_call.1} parent=11 // pred_check
          %p218 = pneg %p76
        $region18: #{tpu_custom_call.1} parent=11 // pred_check_branch
          %220 = sbr.rel (%p218) target = $region20
        $region19: #{tpu_custom_call.1} parent=11 // pred_region
          %s221 = smul.u32 4, %s21
          %p222 = scmp.lt.s32.totalorder %s221, 3
          %s223 = scalar_select %p222, %s221, 3
          %s224 = smul.addr %s223, 8
          %s225 = scalar_lea.vmem %s1, %s224
          %s226 = smul.u32 4, %s21
        $region20: #{tpu_custom_call.1} parent=11 // pred_fallthru
          _
      $region12: #{tpu_custom_call.1} parent=5 // pred_fallthru
        _
      %p227 = scmp.lt.s32.totalorder %s12, 2
      // Predicated region
      $region21: #{tpu_custom_call.1} parent=5 // pred_check
        %p228 = pneg %p227
      $region22: #{tpu_custom_call.1} parent=5 // pred_check_branch
        %230 = sbr.rel (%p228) target = $region24
      $region23: #{tpu_custom_call.1} parent=5 // pred_region
        // Predicated region
        $region25: #{tpu_custom_call.1} parent=23 // pred_check
          %p231 = pneg %p100
        $region26: #{tpu_custom_call.1} parent=23 // pred_check_branch
          %233 = sbr.rel (%p231) target = $region28
        $region27: #{tpu_custom_call.1} parent=23 // pred_region
          %p234 = scmp.lt.s32.totalorder %s20, 0
          %s235 = scalar_select %p234, %s20, 0
          %p236 = scmp.lt.s32.totalorder %s235, 0
          %s237 = scalar_select %p236, %s235, 0
          %s238 = smul.addr %s237, 4
          %s239 = scalar_lea.vmem %s2, %s238
          %p240 = scmp.lt.s32.totalorder %s20, 0
          %s241 = scalar_select %p240, %s20, 0
        $region28: #{tpu_custom_call.1} parent=23 // pred_fallthru
          _
        // Predicated region
        $region29: #{tpu_custom_call.1} parent=23 // pred_check
          %p242 = pneg %p130
        $region30: #{tpu_custom_call.1} parent=23 // pred_check_branch
          %244 = sbr.rel (%p242) target = $region32
        $region31: #{tpu_custom_call.1} parent=23 // pred_region
          %p245 = scmp.lt.s32.totalorder %s20, 0
          %s246 = scalar_select %p245, %s20, 0
          %p247 = scmp.lt.s32.totalorder %s246, 0
          %s248 = scalar_select %p247, %s246, 0
          %s249 = scalar_lea.vmem %s3, %s248
          %p250 = scmp.lt.s32.totalorder %s20, 0
          %s251 = scalar_select %p250, %s20, 0
        $region32: #{tpu_custom_call.1} parent=23 // pred_fallthru
          _
        // Predicated region
        $region33: #{tpu_custom_call.1} parent=23 // pred_check
          %p252 = pneg %p162
        $region34: #{tpu_custom_call.1} parent=23 // pred_check_branch
          %254 = sbr.rel (%p252) target = $region36
        $region35: #{tpu_custom_call.1} parent=23 // pred_region
          %s255 = ssub.s32 %s20, 1
          %p256 = scmp.gt.s32.totalorder %s255, 0
          %s257 = scalar_select %p256, %s255, 0
          %s258 = smul.u32 16, %s257
          %p259 = scmp.lt.s32.totalorder %s258, 15
          %s260 = scalar_select %p259, %s258, 15
          %s261 = smul.addr %s260, 4
          %s262 = scalar_lea.vmem %s4, %s261
          %s263 = ssub.s32 %s20, 1
          %p264 = scmp.gt.s32.totalorder %s263, 0
          %s265 = scalar_select %p264, %s263, 0
          %s266 = smul.u32 16, %s265
        $region36: #{tpu_custom_call.1} parent=23 // pred_fallthru
          _
      $region24: #{tpu_custom_call.1} parent=5 // pred_fallthru
        _
      %p267 = scmp.le.s32.totalorder 1, %s12
      %p268 = scmp.lt.s32.totalorder %s12, 3
      %p269 = pnand %p267, %p268
      %p270 = pneg %p269
      // Predicated region
      $region37: #{tpu_custom_call.1} parent=5 // pred_check
        _
      $region38: #{tpu_custom_call.1} parent=5 // pred_check_branch
        %272 = sbr.rel (%p269) target = $region40
      $region39: #{tpu_custom_call.1} parent=5 // pred_region
        %s273 = ssub.s32 %s12, 1
        %s274 = smul.u32 4, %s21
        %p275 = scmp.lt.s32.totalorder %s274, 3
        %s276 = scalar_select %p275, %s274, 3
        %s277 = smul.addr %s276, 8
        %s278 = scalar_lea.vmem %s0, %s277
        %p279 = pneg %p50
        %p280 = pneg %p47
        %s281 = smul.u32 4, %s21
        %p282 = scmp.lt.s32.totalorder %s281, 3
        %s283 = scalar_select %p282, %s281, 3
        %s284 = smul.addr %s283, 8
        %s285 = scalar_lea.vmem %s1, %s284
        %p286 = pneg %p76
        %p287 = pneg %p73
        %p288 = scmp.lt.s32.totalorder %s22, 0
        %s289 = scalar_select %p288, %s22, 0
        %p290 = scmp.lt.s32.totalorder %s289, 0
        %s291 = scalar_select %p290, %s289, 0
        %s292 = smul.addr %s291, 4
        %s293 = scalar_lea.vmem %s2, %s292
        %p294 = pneg %p106
        %p295 = pneg %p103
        %p296 = scmp.lt.s32.totalorder %s22, 0
        %s297 = scalar_select %p296, %s22, 0
        %p298 = scmp.lt.s32.totalorder %s297, 0
        %s299 = scalar_select %p298, %s297, 0
        %s300 = scalar_lea.vmem %s3, %s299
        %p301 = pneg %p136
        %p302 = pneg %p133
        %s303 = ssub.s32 %s22, 1
        %p304 = scmp.gt.s32.totalorder %s303, 0
        %s305 = scalar_select %p304, %s303, 0
        %s306 = smul.u32 16, %s305
        %p307 = scmp.lt.s32.totalorder %s306, 15
        %s308 = scalar_select %p307, %s306, 15
        %s309 = smul.addr %s308, 4
        %s310 = scalar_lea.vmem %s4, %s309
        %p311 = pneg %p168
        %p312 = pneg %p165
        %p313 = pneg %p194
        %p314 = pneg %p191
        %s315 = smul.u32 4, %s21
        %p316 = scmp.lt.s32.totalorder %s315, 3
        %s317 = scalar_select %p316, %s315, 3
        %s318 = smul.addr %s317, 8
        %s319 = scalar_lea.vmem %s0, %s318
        %s320 = smul.u32 4, %s21
        %s321 = smul.u32 4, %s21
        %p322 = scmp.lt.s32.totalorder %s321, 3
        %s323 = scalar_select %p322, %s321, 3
        %s324 = smul.addr %s323, 8
        %s325 = scalar_lea.vmem %s1, %s324
        %s326 = smul.u32 4, %s21
        %p327 = scmp.lt.s32.totalorder %s22, 0
        %s328 = scalar_select %p327, %s22, 0
        %p329 = scmp.lt.s32.totalorder %s328, 0
        %s330 = scalar_select %p329, %s328, 0
        %s331 = smul.addr %s330, 4
        %s332 = scalar_lea.vmem %s2, %s331
        %p333 = scmp.lt.s32.totalorder %s22, 0
        %s334 = scalar_select %p333, %s22, 0
        %p335 = scmp.lt.s32.totalorder %s22, 0
        %s336 = scalar_select %p335, %s22, 0
        %p337 = scmp.lt.s32.totalorder %s336, 0
        %s338 = scalar_select %p337, %s336, 0
        %s339 = scalar_lea.vmem %s3, %s338
        %p340 = scmp.lt.s32.totalorder %s22, 0
        %s341 = scalar_select %p340, %s22, 0
        %s342 = ssub.s32 %s22, 1
        %p343 = scmp.gt.s32.totalorder %s342, 0
        %s344 = scalar_select %p343, %s342, 0
        %s345 = smul.u32 16, %s344
        %p346 = scmp.lt.s32.totalorder %s345, 15
        %s347 = scalar_select %p346, %s345, 15
        %s348 = smul.addr %s347, 4
        %s349 = scalar_lea.vmem %s4, %s348
        %s350 = ssub.s32 %s22, 1
        %p351 = scmp.gt.s32.totalorder %s350, 0
        %s352 = scalar_select %p351, %s350, 0
        %s353 = smul.u32 16, %s352
        %s354 = smul.u32 4, %s21
        %p356 = scmp.eq.s32.totalorder %s22, 0
        // Predicated region
        $region41: #{tpu_custom_call.1} parent=39 // pred_check
          %p357 = pneg %p356
        $region42: #{tpu_custom_call.1} parent=39 // pred_check_branch
          %359 = sbr.rel (%p357) target = $region44
        $region43: #{tpu_custom_call.1} parent=39 // pred_region
          %vm360 = vcmask 7168
          %361 = vst.msk [vmem:[#allocation2] sm:$0xff] %vm360, 1e+10
          %362 = vst.msk [vmem:[#allocation2 + $0x8] sm:$0xff] %vm360, 1e+10
          %363 = vst.msk [vmem:[#allocation2 + $0x10] sm:$0xff] %vm360, 1e+10
          %364 = vst.msk [vmem:[#allocation2 + $0x18] sm:$0xff] %vm360, 1e+10
          %365 = vst.msk [vmem:[#allocation3] sm:$0xff] %vm360, 1e+10
          %366 = vst.msk [vmem:[#allocation3 + $0x8] sm:$0xff] %vm360, 1e+10
          %367 = vst.msk [vmem:[#allocation3 + $0x10] sm:$0xff] %vm360, 1e+10
          %368 = vst.msk [vmem:[#allocation3 + $0x18] sm:$0xff] %vm360, 1e+10
          %369 = vst.msk [vmem:[#allocation4] sm:$0xff] %vm360, 1e+10
          %370 = vst.msk [vmem:[#allocation4 + $0x8] sm:$0xff] %vm360, 1e+10
          %371 = vst.msk [vmem:[#allocation4 + $0x10] sm:$0xff] %vm360, 1e+10
          %372 = vst.msk [vmem:[#allocation4 + $0x18] sm:$0xff] %vm360, 1e+10
          %373 = vst.msk [vmem:[#allocation5] sm:$0xff] %vm360, 0
          %374 = vst.msk [vmem:[#allocation5 + $0x8] sm:$0xff] %vm360, 0
          %375 = vst.msk [vmem:[#allocation5 + $0x10] sm:$0xff] %vm360, 0
          %376 = vst.msk [vmem:[#allocation5 + $0x18] sm:$0xff] %vm360, 0
          %377 = vst.msk [vmem:[#allocation6] sm:$0xff] %vm360, 0
          %378 = vst.msk [vmem:[#allocation6 + $0x8] sm:$0xff] %vm360, 0
          %379 = vst.msk [vmem:[#allocation6 + $0x10] sm:$0xff] %vm360, 0
          %380 = vst.msk [vmem:[#allocation6 + $0x18] sm:$0xff] %vm360, 0
          %381 = vst.msk [vmem:[#allocation7] sm:$0xff] %vm360, 0
          %382 = vst.msk [vmem:[#allocation7 + $0x8] sm:$0xff] %vm360, 0
          %383 = vst.msk [vmem:[#allocation7 + $0x10] sm:$0xff] %vm360, 0
          %384 = vst.msk [vmem:[#allocation7 + $0x18] sm:$0xff] %vm360, 0
        $region44: #{tpu_custom_call.1} parent=39 // pred_fallthru
          _
        %p385 = scmp.lt.s32.totalorder %s22, 1
        // Predicated region
        $region45: #{tpu_custom_call.1} parent=39 // pred_check
          %p386 = pneg %p385
        $region46: #{tpu_custom_call.1} parent=39 // pred_check_branch
          %388 = sbr.rel (%p386) target = $region48
        $region47: #{tpu_custom_call.1} parent=39 // pred_region
          %s389 = smul.u32 %s22, 128
          %v390 = vld [vmem:[%s319] sm:$0xff]
          %v391 = vld [vmem:[%s319 + $0x8] sm:$0xff]
          %v392 = vld [vmem:[%s319 + $0x10] sm:$0xff]
          %v393 = vld [vmem:[%s319 + $0x18] sm:$0xff]
          %v394 = vld [vmem:[%s325] sm:$0xff]
          %v395 = vld [vmem:[%s325 + $0x8] sm:$0xff]
          %v396 = vld [vmem:[%s325 + $0x10] sm:$0xff]
          %v397 = vld [vmem:[%s325 + $0x18] sm:$0xff]
          %v398 = vld [vmem:[%s332] sm:$0x7]
          %v399 = vld [vmem:[%s339] sm:$0x1]
          %401 = vset.pattern.permute.xlu0 0
          %402 = vperm.xlu0 %401, %v390
          %v403 = vpop.permute.xlu0 %402
          %406 = vset.pattern.permute.xlu0 0
          %407 = vperm.xlu0 %406, %v391
          %v408 = vpop.permute.xlu0 %407
          %411 = vset.pattern.permute.xlu0 0
          %412 = vperm.xlu0 %411, %v392
          %v413 = vpop.permute.xlu0 %412
          %416 = vset.pattern.permute.xlu0 0
          %417 = vperm.xlu0 %416, %v393
          %v418 = vpop.permute.xlu0 %417
          %v420 = vlaneseq
          %v421 = vshrl.u32 %v420, 7
          %v422 = vsub.s32 0, %v421
          %v423 = vrot.slane %v398, %v422
          %v424 = vsub.f32 %v403, %v423
          %v425 = vsub.f32 %v408, %v423
          %v426 = vsub.f32 %v413, %v423
          %v427 = vsub.f32 %v418, %v423
          %428 = vset.pattern.permute.xlu0 1
          %429 = vperm.xlu0 %428, %v390
          %v430 = vpop.permute.xlu0 %429
          %432 = vset.pattern.permute.xlu0 1
          %433 = vperm.xlu0 %432, %v391
          %v434 = vpop.permute.xlu0 %433
          %436 = vset.pattern.permute.xlu0 1
          %437 = vperm.xlu0 %436, %v392
          %v438 = vpop.permute.xlu0 %437
          %440 = vset.pattern.permute.xlu0 1
          %441 = vperm.xlu0 %440, %v393
          %v442 = vpop.permute.xlu0 %441
          %v444 = vlaneseq
          %v445 = vshrl.u32 %v444, 7
          %v446 = vsub.s32 1, %v445
          %v447 = vrot.slane %v398, %v446
          %v448 = vsub.f32 %v430, %v447
          %v449 = vsub.f32 %v434, %v447
          %v450 = vsub.f32 %v438, %v447
          %v451 = vsub.f32 %v442, %v447
          %452 = vset.pattern.permute.xlu0 2
          %453 = vperm.xlu0 %452, %v390
          %v454 = vpop.permute.xlu0 %453
          %456 = vset.pattern.permute.xlu0 2
          %457 = vperm.xlu0 %456, %v391
          %v458 = vpop.permute.xlu0 %457
          %460 = vset.pattern.permute.xlu0 2
          %461 = vperm.xlu0 %460, %v392
          %v462 = vpop.permute.xlu0 %461
          %464 = vset.pattern.permute.xlu0 2
          %465 = vperm.xlu0 %464, %v393
          %v466 = vpop.permute.xlu0 %465
          %v468 = vlaneseq
          %v469 = vshrl.u32 %v468, 7
          %v470 = vsub.s32 2, %v469
          %v471 = vrot.slane %v398, %v470
          %v472 = vsub.f32 %v454, %v471
          %v473 = vsub.f32 %v458, %v471
          %v474 = vsub.f32 %v462, %v471
          %v475 = vsub.f32 %v466, %v471
          %v476 = vmul.f32 %v424, %v424
          %v477 = vmul.f32 %v425, %v425
          %v478 = vmul.f32 %v426, %v426
          %v479 = vmul.f32 %v427, %v427
          %v480 = vmul.f32 %v448, %v448
          %v481 = vmul.f32 %v449, %v449
          %v482 = vmul.f32 %v450, %v450
          %v483 = vmul.f32 %v451, %v451
          %v484 = vadd.f32 %v476, %v480
          %v485 = vadd.f32 %v477, %v481
          %v486 = vadd.f32 %v478, %v482
          %v487 = vadd.f32 %v479, %v483
          %v488 = vmul.f32 %v472, %v472
          %v489 = vmul.f32 %v473, %v473
          %v490 = vmul.f32 %v474, %v474
          %v491 = vmul.f32 %v475, %v475
          %v492 = vadd.f32 %v484, %v488
          %v493 = vadd.f32 %v485, %v489
          %v494 = vadd.f32 %v486, %v490
          %v495 = vadd.f32 %v487, %v491
          %496 = vset.pattern.permute.xlu0 0
          %497 = vperm.xlu0 %496, %v394
          %v498 = vpop.permute.xlu0 %497
          %499 = vset.pattern.permute.xlu0 0
          %500 = vperm.xlu0 %499, %v395
          %v501 = vpop.permute.xlu0 %500
          %502 = vset.pattern.permute.xlu0 0
          %503 = vperm.xlu0 %502, %v396
          %v504 = vpop.permute.xlu0 %503
          %505 = vset.pattern.permute.xlu0 0
          %506 = vperm.xlu0 %505, %v397
          %v507 = vpop.permute.xlu0 %506
          %v508 = vlaneseq
          %v509 = vshrl.u32 %v508, 7
          %v510 = vsub.s32 0, %v509
          %v511 = vrot.slane %v399, %v510
          %vm512 = vcmp.eq.s32.totalorder %v498, %v511
          %vm513 = vcmp.eq.s32.totalorder %v501, %v511
          %vm514 = vcmp.eq.s32.totalorder %v504, %v511
          %vm515 = vcmp.eq.s32.totalorder %v507, %v511
          %v516 = vsel %vm512, %v492, 1e+10
          %v517 = vsel %vm513, %v493, 1e+10
          %v518 = vsel %vm514, %v494, 1e+10
          %v519 = vsel %vm515, %v495, 1e+10
          %v520 = vlaneseq
          %v521 = vand.u32 %v520, 127
          %v522 = vld [vmem:[#allocation2] sm:$0xff]
          %v523 = vld [vmem:[#allocation2 + $0x8] sm:$0xff]
          %v524 = vld [vmem:[#allocation2 + $0x10] sm:$0xff]
          %v525 = vld [vmem:[#allocation2 + $0x18] sm:$0xff]
          %v526 = vld [vmem:[#allocation3] sm:$0xff]
          %v527 = vld [vmem:[#allocation3 + $0x8] sm:$0xff]
          %v528 = vld [vmem:[#allocation3 + $0x10] sm:$0xff]
          %v529 = vld [vmem:[#allocation3 + $0x18] sm:$0xff]
          %v530 = vld [vmem:[#allocation4] sm:$0xff]
          %v531 = vld [vmem:[#allocation4 + $0x8] sm:$0xff]
          %v532 = vld [vmem:[#allocation4 + $0x10] sm:$0xff]
          %v533 = vld [vmem:[#allocation4 + $0x18] sm:$0xff]
          %v534 = vld [vmem:[#allocation5] sm:$0xff]
          %v535 = vld [vmem:[#allocation5 + $0x8] sm:$0xff]
          %v536 = vld [vmem:[#allocation5 + $0x10] sm:$0xff]
          %v537 = vld [vmem:[#allocation5 + $0x18] sm:$0xff]
          %v538 = vld [vmem:[#allocation6] sm:$0xff]
          %v539 = vld [vmem:[#allocation6 + $0x8] sm:$0xff]
          %v540 = vld [vmem:[#allocation6 + $0x10] sm:$0xff]
          %v541 = vld [vmem:[#allocation6 + $0x18] sm:$0xff]
          %v542 = vld [vmem:[#allocation7] sm:$0xff]
          %v543 = vld [vmem:[#allocation7 + $0x8] sm:$0xff]
          %v544 = vld [vmem:[#allocation7 + $0x10] sm:$0xff]
          %v545 = vld [vmem:[#allocation7 + $0x18] sm:$0xff]
          %546 = vmin.xlane.f32.xlu0 %v516
          %v547 = vpop.xlane.xlu0 %546
          %548 = vmin.xlane.f32.xlu0 %v517
          %v549 = vpop.xlane.xlu0 %548
          %550 = vmin.xlane.f32.xlu0 %v518
          %v551 = vpop.xlane.xlu0 %550
          %552 = vmin.xlane.f32.xlu0 %v519
          %v553 = vpop.xlane.xlu0 %552
          %554 = vmin.index.xlane.f32.xlu0 %v516
          %v555 = vpop.xlane.xlu0 %554
          %556 = vmin.index.xlane.f32.xlu0 %v517
          %v557 = vpop.xlane.xlu0 %556
          %558 = vmin.index.xlane.f32.xlu0 %v518
          %v559 = vpop.xlane.xlu0 %558
          %560 = vmin.index.xlane.f32.xlu0 %v519
          %v561 = vpop.xlane.xlu0 %560
          %v562 = vstv %s389
          %v563 = vadd.s32 %v562, %v555
          %v564 = vadd.s32 %v562, %v557
          %v565 = vadd.s32 %v562, %v559
          %v566 = vadd.s32 %v562, %v561
          %vm567 = vcmp.eq.s32.totalorder %v521, %v555
          %vm568 = vcmp.eq.s32.totalorder %v521, %v557
          %vm569 = vcmp.eq.s32.totalorder %v521, %v559
          %vm570 = vcmp.eq.s32.totalorder %v521, %v561
          %v571 = vsel %vm567, 1e+10, %v516
          %v572 = vsel %vm568, 1e+10, %v517
          %v573 = vsel %vm569, 1e+10, %v518
          %v574 = vsel %vm570, 1e+10, %v519
          %vm575 = vcmp.lt.f32.partialorder %v547, %v522
          %vm576 = vcmp.lt.f32.partialorder %v549, %v523
          %vm577 = vcmp.lt.f32.partialorder %v551, %v524
          %vm578 = vcmp.lt.f32.partialorder %v553, %v525
          %vm579 = vcmp.lt.f32.partialorder %v547, %v526
          %vm580 = vcmp.lt.f32.partialorder %v549, %v527
          %vm581 = vcmp.lt.f32.partialorder %v551, %v528
          %vm582 = vcmp.lt.f32.partialorder %v553, %v529
          %vm583 = vcmp.lt.f32.partialorder %v547, %v530
          %vm584 = vcmp.lt.f32.partialorder %v549, %v531
          %vm585 = vcmp.lt.f32.partialorder %v551, %v532
          %vm586 = vcmp.lt.f32.partialorder %v553, %v533
          %v587 = vsel %vm575, %v547, %v522
          %v588 = vsel %vm576, %v549, %v523
          %v589 = vsel %vm577, %v551, %v524
          %v590 = vsel %vm578, %v553, %v525
          %v591 = vsel %vm575, %v563, %v534
          %v592 = vsel %vm576, %v564, %v535
          %v593 = vsel %vm577, %v565, %v536
          %v594 = vsel %vm578, %v566, %v537
          %v595 = vsel %vm579, %v547, %v526
          %v596 = vsel %vm580, %v549, %v527
          %v597 = vsel %vm581, %v551, %v528
          %v598 = vsel %vm582, %v553, %v529
          %v599 = vsel %vm575, %v522, %v595
          %v600 = vsel %vm576, %v523, %v596
          %v601 = vsel %vm577, %v524, %v597
          %v602 = vsel %vm578, %v525, %v598
          %v603 = vsel %vm579, %v563, %v538
          %v604 = vsel %vm580, %v564, %v539
          %v605 = vsel %vm581, %v565, %v540
          %v606 = vsel %vm582, %v566, %v541
          %v607 = vsel %vm575, %v534, %v603
          %v608 = vsel %vm576, %v535, %v604
          %v609 = vsel %vm577, %v536, %v605
          %v610 = vsel %vm578, %v537, %v606
          %v611 = vsel %vm583, %v547, %v530
          %v612 = vsel %vm584, %v549, %v531
          %v613 = vsel %vm585, %v551, %v532
          %v614 = vsel %vm586, %v553, %v533
          %v615 = vsel %vm579, %v526, %v611
          %v616 = vsel %vm580, %v527, %v612
          %v617 = vsel %vm581, %v528, %v613
          %v618 = vsel %vm582, %v529, %v614
          %v619 = vsel %vm583, %v563, %v542
          %v620 = vsel %vm584, %v564, %v543
          %v621 = vsel %vm585, %v565, %v544
          %v622 = vsel %vm586, %v566, %v545
          %v623 = vsel %vm579, %v538, %v619
          %v624 = vsel %vm580, %v539, %v620
          %v625 = vsel %vm581, %v540, %v621
          %v626 = vsel %vm582, %v541, %v622
          %627 = vmin.xlane.f32.xlu0 %v571
          %v628 = vpop.xlane.xlu0 %627
          %629 = vmin.xlane.f32.xlu0 %v572
          %v630 = vpop.xlane.xlu0 %629
          %631 = vmin.xlane.f32.xlu0 %v573
          %v632 = vpop.xlane.xlu0 %631
          %633 = vmin.xlane.f32.xlu0 %v574
          %v634 = vpop.xlane.xlu0 %633
          %635 = vmin.index.xlane.f32.xlu0 %v571
          %v636 = vpop.xlane.xlu0 %635
          %637 = vmin.index.xlane.f32.xlu0 %v572
          %v638 = vpop.xlane.xlu0 %637
          %639 = vmin.index.xlane.f32.xlu0 %v573
          %v640 = vpop.xlane.xlu0 %639
          %641 = vmin.index.xlane.f32.xlu0 %v574
          %v642 = vpop.xlane.xlu0 %641
          %v643 = vadd.s32 %v562, %v636
          %v644 = vadd.s32 %v562, %v638
          %v645 = vadd.s32 %v562, %v640
          %v646 = vadd.s32 %v562, %v642
          %vm647 = vcmp.eq.s32.totalorder %v521, %v636
          %vm648 = vcmp.eq.s32.totalorder %v521, %v638
          %vm649 = vcmp.eq.s32.totalorder %v521, %v640
          %vm650 = vcmp.eq.s32.totalorder %v521, %v642
          %v651 = vsel %vm647, 1e+10, %v571
          %v652 = vsel %vm648, 1e+10, %v572
          %v653 = vsel %vm649, 1e+10, %v573
          %v654 = vsel %vm650, 1e+10, %v574
          %vm655 = vcmp.lt.f32.partialorder %v628, %v587
          %vm656 = vcmp.lt.f32.partialorder %v630, %v588
          %vm657 = vcmp.lt.f32.partialorder %v632, %v589
          %vm658 = vcmp.lt.f32.partialorder %v634, %v590
          %vm659 = vcmp.lt.f32.partialorder %v628, %v599
          %vm660 = vcmp.lt.f32.partialorder %v630, %v600
          %vm661 = vcmp.lt.f32.partialorder %v632, %v601
          %vm662 = vcmp.lt.f32.partialorder %v634, %v602
          %vm663 = vcmp.lt.f32.partialorder %v628, %v615
          %vm664 = vcmp.lt.f32.partialorder %v630, %v616
          %vm665 = vcmp.lt.f32.partialorder %v632, %v617
          %vm666 = vcmp.lt.f32.partialorder %v634, %v618
          %v667 = vsel %vm655, %v628, %v587
          %v668 = vsel %vm656, %v630, %v588
          %v669 = vsel %vm657, %v632, %v589
          %v670 = vsel %vm658, %v634, %v590
          %v671 = vsel %vm655, %v643, %v591
          %v672 = vsel %vm656, %v644, %v592
          %v673 = vsel %vm657, %v645, %v593
          %v674 = vsel %vm658, %v646, %v594
          %v675 = vsel %vm659, %v628, %v599
          %v676 = vsel %vm660, %v630, %v600
          %v677 = vsel %vm661, %v632, %v601
          %v678 = vsel %vm662, %v634, %v602
          %v679 = vsel %vm655, %v587, %v675
          %v680 = vsel %vm656, %v588, %v676
          %v681 = vsel %vm657, %v589, %v677
          %v682 = vsel %vm658, %v590, %v678
          %v683 = vsel %vm659, %v643, %v607
          %v684 = vsel %vm660, %v644, %v608
          %v685 = vsel %vm661, %v645, %v609
          %v686 = vsel %vm662, %v646, %v610
          %v687 = vsel %vm655, %v591, %v683
          %v688 = vsel %vm656, %v592, %v684
          %v689 = vsel %vm657, %v593, %v685
          %v690 = vsel %vm658, %v594, %v686
          %v691 = vsel %vm663, %v628, %v615
          %v692 = vsel %vm664, %v630, %v616
          %v693 = vsel %vm665, %v632, %v617
          %v694 = vsel %vm666, %v634, %v618
          %v695 = vsel %vm659, %v599, %v691
          %v696 = vsel %vm660, %v600, %v692
          %v697 = vsel %vm661, %v601, %v693
          %v698 = vsel %vm662, %v602, %v694
          %v699 = vsel %vm663, %v643, %v623
          %v700 = vsel %vm664, %v644, %v624
          %v701 = vsel %vm665, %v645, %v625
          %v702 = vsel %vm666, %v646, %v626
          %v703 = vsel %vm659, %v607, %v699
          %v704 = vsel %vm660, %v608, %v700
          %v705 = vsel %vm661, %v609, %v701
          %v706 = vsel %vm662, %v610, %v702
          %707 = vmin.xlane.f32.xlu0 %v651
          %v708 = vpop.xlane.xlu0 %707
          %709 = vmin.xlane.f32.xlu0 %v652
          %v710 = vpop.xlane.xlu0 %709
          %711 = vmin.xlane.f32.xlu0 %v653
          %v712 = vpop.xlane.xlu0 %711
          %713 = vmin.xlane.f32.xlu0 %v654
          %v714 = vpop.xlane.xlu0 %713
          %715 = vmin.index.xlane.f32.xlu0 %v651
          %v716 = vpop.xlane.xlu0 %715
          %717 = vmin.index.xlane.f32.xlu0 %v652
          %v718 = vpop.xlane.xlu0 %717
          %719 = vmin.index.xlane.f32.xlu0 %v653
          %v720 = vpop.xlane.xlu0 %719
          %721 = vmin.index.xlane.f32.xlu0 %v654
          %v722 = vpop.xlane.xlu0 %721
          %v723 = vadd.s32 %v562, %v716
          %v724 = vadd.s32 %v562, %v718
          %v725 = vadd.s32 %v562, %v720
          %v726 = vadd.s32 %v562, %v722
          %vm727 = vcmp.lt.f32.partialorder %v708, %v667
          %vm728 = vcmp.lt.f32.partialorder %v710, %v668
          %vm729 = vcmp.lt.f32.partialorder %v712, %v669
          %vm730 = vcmp.lt.f32.partialorder %v714, %v670
          %vm731 = vcmp.lt.f32.partialorder %v708, %v679
          %vm732 = vcmp.lt.f32.partialorder %v710, %v680
          %vm733 = vcmp.lt.f32.partialorder %v712, %v681
          %vm734 = vcmp.lt.f32.partialorder %v714, %v682
          %vm735 = vcmp.lt.f32.partialorder %v708, %v695
          %vm736 = vcmp.lt.f32.partialorder %v710, %v696
          %vm737 = vcmp.lt.f32.partialorder %v712, %v697
          %vm738 = vcmp.lt.f32.partialorder %v714, %v698
          %v739 = vsel %vm727, %v708, %v667
          %v740 = vsel %vm728, %v710, %v668
          %v741 = vsel %vm729, %v712, %v669
          %v742 = vsel %vm730, %v714, %v670
          %v743 = vsel %vm727, %v723, %v671
          %v744 = vsel %vm728, %v724, %v672
          %v745 = vsel %vm729, %v725, %v673
          %v746 = vsel %vm730, %v726, %v674
          %v747 = vsel %vm731, %v708, %v679
          %v748 = vsel %vm732, %v710, %v680
          %v749 = vsel %vm733, %v712, %v681
          %v750 = vsel %vm734, %v714, %v682
          %v751 = vsel %vm727, %v667, %v747
          %v752 = vsel %vm728, %v668, %v748
          %v753 = vsel %vm729, %v669, %v749
          %v754 = vsel %vm730, %v670, %v750
          %v755 = vsel %vm731, %v723, %v687
          %v756 = vsel %vm732, %v724, %v688
          %v757 = vsel %vm733, %v725, %v689
          %v758 = vsel %vm734, %v726, %v690
          %v759 = vsel %vm727, %v671, %v755
          %v760 = vsel %vm728, %v672, %v756
          %v761 = vsel %vm729, %v673, %v757
          %v762 = vsel %vm730, %v674, %v758
          %v763 = vsel %vm735, %v708, %v695
          %v764 = vsel %vm736, %v710, %v696
          %v765 = vsel %vm737, %v712, %v697
          %v766 = vsel %vm738, %v714, %v698
          %v767 = vsel %vm731, %v679, %v763
          %v768 = vsel %vm732, %v680, %v764
          %v769 = vsel %vm733, %v681, %v765
          %v770 = vsel %vm734, %v682, %v766
          %v771 = vsel %vm735, %v723, %v703
          %v772 = vsel %vm736, %v724, %v704
          %v773 = vsel %vm737, %v725, %v705
          %v774 = vsel %vm738, %v726, %v706
          %v775 = vsel %vm731, %v687, %v771
          %v776 = vsel %vm732, %v688, %v772
          %v777 = vsel %vm733, %v689, %v773
          %v778 = vsel %vm734, %v690, %v774
          %vm779 = vcmask 7168
          %780 = vst.msk [vmem:[#allocation2] sm:$0xff] %vm779, %v739
          %781 = vst.msk [vmem:[#allocation2 + $0x8] sm:$0xff] %vm779, %v740
          %782 = vst.msk [vmem:[#allocation2 + $0x10] sm:$0xff] %vm779, %v741
          %783 = vst.msk [vmem:[#allocation2 + $0x18] sm:$0xff] %vm779, %v742
          %784 = vst.msk [vmem:[#allocation3] sm:$0xff] %vm779, %v751
          %785 = vst.msk [vmem:[#allocation3 + $0x8] sm:$0xff] %vm779, %v752
          %786 = vst.msk [vmem:[#allocation3 + $0x10] sm:$0xff] %vm779, %v753
          %787 = vst.msk [vmem:[#allocation3 + $0x18] sm:$0xff] %vm779, %v754
          %788 = vst.msk [vmem:[#allocation4] sm:$0xff] %vm779, %v767
          %789 = vst.msk [vmem:[#allocation4 + $0x8] sm:$0xff] %vm779, %v768
          %790 = vst.msk [vmem:[#allocation4 + $0x10] sm:$0xff] %vm779, %v769
          %791 = vst.msk [vmem:[#allocation4 + $0x18] sm:$0xff] %vm779, %v770
          %792 = vst.msk [vmem:[#allocation5] sm:$0xff] %vm779, %v743
          %793 = vst.msk [vmem:[#allocation5 + $0x8] sm:$0xff] %vm779, %v744
          %794 = vst.msk [vmem:[#allocation5 + $0x10] sm:$0xff] %vm779, %v745
          %795 = vst.msk [vmem:[#allocation5 + $0x18] sm:$0xff] %vm779, %v746
          %796 = vst.msk [vmem:[#allocation6] sm:$0xff] %vm779, %v759
          %797 = vst.msk [vmem:[#allocation6 + $0x8] sm:$0xff] %vm779, %v760
          %798 = vst.msk [vmem:[#allocation6 + $0x10] sm:$0xff] %vm779, %v761
          %799 = vst.msk [vmem:[#allocation6 + $0x18] sm:$0xff] %vm779, %v762
          %800 = vst.msk [vmem:[#allocation7] sm:$0xff] %vm779, %v775
          %801 = vst.msk [vmem:[#allocation7 + $0x8] sm:$0xff] %vm779, %v776
          %802 = vst.msk [vmem:[#allocation7 + $0x10] sm:$0xff] %vm779, %v777
          %803 = vst.msk [vmem:[#allocation7 + $0x18] sm:$0xff] %vm779, %v778
        $region48: #{tpu_custom_call.1} parent=39 // pred_fallthru
          _
        %p804 = scmp.eq.s32.totalorder %s22, 1
        // Predicated region
        $region49: #{tpu_custom_call.1} parent=39 // pred_check
          %p805 = pneg %p804
        $region50: #{tpu_custom_call.1} parent=39 // pred_check_branch
          %807 = sbr.rel (%p805) target = $region52
        $region51: #{tpu_custom_call.1} parent=39 // pred_region
          %808 = vst [vmem:[#allocation8] sm:$0xff] 0.0
          %809 = vst [vmem:[#allocation8 + $0x8] sm:$0xff] 0.0
          %810 = vst [vmem:[#allocation8 + $0x10] sm:$0xff] 0.0
          %811 = vst [vmem:[#allocation8 + $0x18] sm:$0xff] 0.0
        $region52: #{tpu_custom_call.1} parent=39 // pred_fallthru
          _
        %p812 = scmp.ge.s32.totalorder %s22, 1
        // Predicated region
        $region53: #{tpu_custom_call.1} parent=39 // pred_check
          %p813 = pneg %p812
        $region54: #{tpu_custom_call.1} parent=39 // pred_check_branch
          %815 = sbr.rel (%p813) target = $region56
        $region55: #{tpu_custom_call.1} parent=39 // pred_region
          %s816 = ssub.s32 %s22, 1
          %s817 = smul.u32 %s816, 128
          %v818 = vld [vmem:[#allocation2] sm:$0xff]
          %v819 = vld [vmem:[#allocation2 + $0x8] sm:$0xff]
          %v820 = vld [vmem:[#allocation2 + $0x10] sm:$0xff]
          %v821 = vld [vmem:[#allocation2 + $0x18] sm:$0xff]
          %v822 = vrsqrt.pop %v818
          %v823 = vmul.f32 %v818, %v822
          %vm824 = vcmp.eq.f32.partialorder %v818, inf
          %v825 = vsel %vm824, %v818, %v823
          %vm826 = vcmp.eq.f32.partialorder %v818, 0.0
          %v827 = vand.u32 %v818, 2147483648
          %v828 = vsel %vm826, %v827, %v825
          %v829 = vrsqrt.pop %v819
          %v830 = vmul.f32 %v819, %v829
          %vm831 = vcmp.eq.f32.partialorder %v819, inf
          %v832 = vsel %vm831, %v819, %v830
          %vm833 = vcmp.eq.f32.partialorder %v819, 0.0
          %v834 = vand.u32 %v819, 2147483648
          %v835 = vsel %vm833, %v834, %v832
          %v836 = vrsqrt.pop %v820
          %v837 = vmul.f32 %v820, %v836
          %vm838 = vcmp.eq.f32.partialorder %v820, inf
          %v839 = vsel %vm838, %v820, %v837
          %vm840 = vcmp.eq.f32.partialorder %v820, 0.0
          %v841 = vand.u32 %v820, 2147483648
          %v842 = vsel %vm840, %v841, %v839
          %v843 = vrsqrt.pop %v821
          %v844 = vmul.f32 %v821, %v843
          %vm845 = vcmp.eq.f32.partialorder %v821, inf
          %v846 = vsel %vm845, %v821, %v844
          %vm847 = vcmp.eq.f32.partialorder %v821, 0.0
          %v848 = vand.u32 %v821, 2147483648
          %v849 = vsel %vm847, %v848, %v846
          %v850 = vadd.f32 %v828, 1e-08
          %v851 = vadd.f32 %v835, 1e-08
          %v852 = vadd.f32 %v842, 1e-08
          %v853 = vadd.f32 %v849, 1e-08
          %v854 = vrcp.pop %v850
          %v855 = vmul.f32 1.0, %v854
          %v856 = vrcp.pop %v851
          %v857 = vmul.f32 1.0, %v856
          %v858 = vrcp.pop %v852
          %v859 = vmul.f32 1.0, %v858
          %v860 = vrcp.pop %v853
          %v861 = vmul.f32 1.0, %v860
          %v862 = vld [vmem:[#allocation3] sm:$0xff]
          %v863 = vld [vmem:[#allocation3 + $0x8] sm:$0xff]
          %v864 = vld [vmem:[#allocation3 + $0x10] sm:$0xff]
          %v865 = vld [vmem:[#allocation3 + $0x18] sm:$0xff]
          %v866 = vrsqrt.pop %v862
          %v867 = vmul.f32 %v862, %v866
          %vm868 = vcmp.eq.f32.partialorder %v862, inf
          %v869 = vsel %vm868, %v862, %v867
          %vm870 = vcmp.eq.f32.partialorder %v862, 0.0
          %v871 = vand.u32 %v862, 2147483648
          %v872 = vsel %vm870, %v871, %v869
          %v873 = vrsqrt.pop %v863
          %v874 = vmul.f32 %v863, %v873
          %vm875 = vcmp.eq.f32.partialorder %v863, inf
          %v876 = vsel %vm875, %v863, %v874
          %vm877 = vcmp.eq.f32.partialorder %v863, 0.0
          %v878 = vand.u32 %v863, 2147483648
          %v879 = vsel %vm877, %v878, %v876
          %v880 = vrsqrt.pop %v864
          %v881 = vmul.f32 %v864, %v880
          %vm882 = vcmp.eq.f32.partialorder %v864, inf
          %v883 = vsel %vm882, %v864, %v881
          %vm884 = vcmp.eq.f32.partialorder %v864, 0.0
          %v885 = vand.u32 %v864, 2147483648
          %v886 = vsel %vm884, %v885, %v883
          %v887 = vrsqrt.pop %v865
          %v888 = vmul.f32 %v865, %v887
          %vm889 = vcmp.eq.f32.partialorder %v865, inf
          %v890 = vsel %vm889, %v865, %v888
          %vm891 = vcmp.eq.f32.partialorder %v865, 0.0
          %v892 = vand.u32 %v865, 2147483648
          %v893 = vsel %vm891, %v892, %v890
          %v894 = vadd.f32 %v872, 1e-08
          %v895 = vadd.f32 %v879, 1e-08
          %v896 = vadd.f32 %v886, 1e-08
          %v897 = vadd.f32 %v893, 1e-08
          %v898 = vrcp.pop %v894
          %v899 = vmul.f32 1.0, %v898
          %v900 = vrcp.pop %v895
          %v901 = vmul.f32 1.0, %v900
          %v902 = vrcp.pop %v896
          %v903 = vmul.f32 1.0, %v902
          %v904 = vrcp.pop %v897
          %v905 = vmul.f32 1.0, %v904
          %v906 = vld [vmem:[#allocation4] sm:$0xff]
          %v907 = vld [vmem:[#allocation4 + $0x8] sm:$0xff]
          %v908 = vld [vmem:[#allocation4 + $0x10] sm:$0xff]
          %v909 = vld [vmem:[#allocation4 + $0x18] sm:$0xff]
          %v910 = vrsqrt.pop %v906
          %v911 = vmul.f32 %v906, %v910
          %vm912 = vcmp.eq.f32.partialorder %v906, inf
          %v913 = vsel %vm912, %v906, %v911
          %vm914 = vcmp.eq.f32.partialorder %v906, 0.0
          %v915 = vand.u32 %v906, 2147483648
          %v916 = vsel %vm914, %v915, %v913
          %v917 = vrsqrt.pop %v907
          %v918 = vmul.f32 %v907, %v917
          %vm919 = vcmp.eq.f32.partialorder %v907, inf
          %v920 = vsel %vm919, %v907, %v918
          %vm921 = vcmp.eq.f32.partialorder %v907, 0.0
          %v922 = vand.u32 %v907, 2147483648
          %v923 = vsel %vm921, %v922, %v920
          %v924 = vrsqrt.pop %v908
          %v925 = vmul.f32 %v908, %v924
          %vm926 = vcmp.eq.f32.partialorder %v908, inf
          %v927 = vsel %vm926, %v908, %v925
          %vm928 = vcmp.eq.f32.partialorder %v908, 0.0
          %v929 = vand.u32 %v908, 2147483648
          %v930 = vsel %vm928, %v929, %v927
          %v931 = vrsqrt.pop %v909
          %v932 = vmul.f32 %v909, %v931
          %vm933 = vcmp.eq.f32.partialorder %v909, inf
          %v934 = vsel %vm933, %v909, %v932
          %vm935 = vcmp.eq.f32.partialorder %v909, 0.0
          %v936 = vand.u32 %v909, 2147483648
          %v937 = vsel %vm935, %v936, %v934
          %v938 = vadd.f32 %v916, 1e-08
          %v939 = vadd.f32 %v923, 1e-08
          %v940 = vadd.f32 %v930, 1e-08
          %v941 = vadd.f32 %v937, 1e-08
          %v942 = vrcp.pop %v938
          %v943 = vmul.f32 1.0, %v942
          %v944 = vrcp.pop %v939
          %v945 = vmul.f32 1.0, %v944
          %v946 = vrcp.pop %v940
          %v947 = vmul.f32 1.0, %v946
          %v948 = vrcp.pop %v941
          %v949 = vmul.f32 1.0, %v948
          %v950 = vadd.f32 %v855, %v899
          %v951 = vadd.f32 %v857, %v901
          %v952 = vadd.f32 %v859, %v903
          %v953 = vadd.f32 %v861, %v905
          %v954 = vadd.f32 %v950, %v943
          %v955 = vadd.f32 %v951, %v945
          %v956 = vadd.f32 %v952, %v947
          %v957 = vadd.f32 %v953, %v949
          %v958 = vrcp.pop %v954
          %v959 = vmul.f32 1.0, %v958
          %v960 = vrcp.pop %v955
          %v961 = vmul.f32 1.0, %v960
          %v962 = vrcp.pop %v956
          %v963 = vmul.f32 1.0, %v962
          %v964 = vrcp.pop %v957
          %v965 = vmul.f32 1.0, %v964
          %v966 = vmul.f32 %v855, %v959
          %v967 = vmul.f32 %v857, %v961
          %v968 = vmul.f32 %v859, %v963
          %v969 = vmul.f32 %v861, %v965
          %v970 = vmul.f32 %v899, %v959
          %v971 = vmul.f32 %v901, %v961
          %v972 = vmul.f32 %v903, %v963
          %v973 = vmul.f32 %v905, %v965
          %v974 = vmul.f32 %v943, %v959
          %v975 = vmul.f32 %v945, %v961
          %v976 = vmul.f32 %v947, %v963
          %v977 = vmul.f32 %v949, %v965
          %v978 = vlaneseq
          %v979 = vand.u32 %v978, 127
          %v980 = vstv %s817
          %v981 = vadd.s32 %v980, %v979
          %v982 = vld [vmem:[#allocation5] sm:$0xff]
          %v983 = vld [vmem:[#allocation5 + $0x8] sm:$0xff]
          %v984 = vld [vmem:[#allocation5 + $0x10] sm:$0xff]
          %v985 = vld [vmem:[#allocation5 + $0x18] sm:$0xff]
          %986 = vset.pattern.permute.xlu0 0
          %987 = vperm.xlu0 %986, %v982
          %v988 = vpop.permute.xlu0 %987
          %989 = vset.pattern.permute.xlu0 0
          %990 = vperm.xlu0 %989, %v983
          %v991 = vpop.permute.xlu0 %990
          %992 = vset.pattern.permute.xlu0 0
          %993 = vperm.xlu0 %992, %v984
          %v994 = vpop.permute.xlu0 %993
          %995 = vset.pattern.permute.xlu0 0
          %996 = vperm.xlu0 %995, %v985
          %v997 = vpop.permute.xlu0 %996
          %vm998 = vcmp.eq.s32.totalorder %v981, %v988
          %vm999 = vcmp.eq.s32.totalorder %v981, %v991
          %vm1000 = vcmp.eq.s32.totalorder %v981, %v994
          %vm1001 = vcmp.eq.s32.totalorder %v981, %v997
          %1003 = vset.pattern.permute.xlu0 0
          %1004 = vperm.xlu0 %1003, %v966
          %v1005 = vpop.permute.xlu0 %1004
          %1008 = vset.pattern.permute.xlu0 0
          %1009 = vperm.xlu0 %1008, %v967
          %v1010 = vpop.permute.xlu0 %1009
          %1013 = vset.pattern.permute.xlu0 0
          %1014 = vperm.xlu0 %1013, %v968
          %v1015 = vpop.permute.xlu0 %1014
          %1018 = vset.pattern.permute.xlu0 0
          %1019 = vperm.xlu0 %1018, %v969
          %v1020 = vpop.permute.xlu0 %1019
          %v1022 = vsel %vm998, %v1005, 0.0
          %v1023 = vsel %vm999, %v1010, 0.0
          %v1024 = vsel %vm1000, %v1015, 0.0
          %v1025 = vsel %vm1001, %v1020, 0.0
          %v1026 = vld [vmem:[#allocation6] sm:$0xff]
          %v1027 = vld [vmem:[#allocation6 + $0x8] sm:$0xff]
          %v1028 = vld [vmem:[#allocation6 + $0x10] sm:$0xff]
          %v1029 = vld [vmem:[#allocation6 + $0x18] sm:$0xff]
          %1030 = vset.pattern.permute.xlu0 0
          %1031 = vperm.xlu0 %1030, %v1026
          %v1032 = vpop.permute.xlu0 %1031
          %1033 = vset.pattern.permute.xlu0 0
          %1034 = vperm.xlu0 %1033, %v1027
          %v1035 = vpop.permute.xlu0 %1034
          %1036 = vset.pattern.permute.xlu0 0
          %1037 = vperm.xlu0 %1036, %v1028
          %v1038 = vpop.permute.xlu0 %1037
          %1039 = vset.pattern.permute.xlu0 0
          %1040 = vperm.xlu0 %1039, %v1029
          %v1041 = vpop.permute.xlu0 %1040
          %vm1042 = vcmp.eq.s32.totalorder %v981, %v1032
          %vm1043 = vcmp.eq.s32.totalorder %v981, %v1035
          %vm1044 = vcmp.eq.s32.totalorder %v981, %v1038
          %vm1045 = vcmp.eq.s32.totalorder %v981, %v1041
          %1047 = vset.pattern.permute.xlu0 0
          %1048 = vperm.xlu0 %1047, %v970
          %v1049 = vpop.permute.xlu0 %1048
          %1052 = vset.pattern.permute.xlu0 0
          %1053 = vperm.xlu0 %1052, %v971
          %v1054 = vpop.permute.xlu0 %1053
          %1057 = vset.pattern.permute.xlu0 0
          %1058 = vperm.xlu0 %1057, %v972
          %v1059 = vpop.permute.xlu0 %1058
          %1062 = vset.pattern.permute.xlu0 0
          %1063 = vperm.xlu0 %1062, %v973
          %v1064 = vpop.permute.xlu0 %1063
          %v1066 = vsel %vm1042, %v1049, 0.0
          %v1067 = vsel %vm1043, %v1054, 0.0
          %v1068 = vsel %vm1044, %v1059, 0.0
          %v1069 = vsel %vm1045, %v1064, 0.0
          %v1070 = vadd.f32 %v1022, %v1066
          %v1071 = vadd.f32 %v1023, %v1067
          %v1072 = vadd.f32 %v1024, %v1068
          %v1073 = vadd.f32 %v1025, %v1069
          %v1074 = vld [vmem:[#allocation7] sm:$0xff]
          %v1075 = vld [vmem:[#allocation7 + $0x8] sm:$0xff]
          %v1076 = vld [vmem:[#allocation7 + $0x10] sm:$0xff]
          %v1077 = vld [vmem:[#allocation7 + $0x18] sm:$0xff]
          %1078 = vset.pattern.permute.xlu0 0
          %1079 = vperm.xlu0 %1078, %v1074
          %v1080 = vpop.permute.xlu0 %1079
          %1081 = vset.pattern.permute.xlu0 0
          %1082 = vperm.xlu0 %1081, %v1075
          %v1083 = vpop.permute.xlu0 %1082
          %1084 = vset.pattern.permute.xlu0 0
          %1085 = vperm.xlu0 %1084, %v1076
          %v1086 = vpop.permute.xlu0 %1085
          %1087 = vset.pattern.permute.xlu0 0
          %1088 = vperm.xlu0 %1087, %v1077
          %v1089 = vpop.permute.xlu0 %1088
          %vm1090 = vcmp.eq.s32.totalorder %v981, %v1080
          %vm1091 = vcmp.eq.s32.totalorder %v981, %v1083
          %vm1092 = vcmp.eq.s32.totalorder %v981, %v1086
          %vm1093 = vcmp.eq.s32.totalorder %v981, %v1089
          %1095 = vset.pattern.permute.xlu0 0
          %1096 = vperm.xlu0 %1095, %v974
          %v1097 = vpop.permute.xlu0 %1096
          %1100 = vset.pattern.permute.xlu0 0
          %1101 = vperm.xlu0 %1100, %v975
          %v1102 = vpop.permute.xlu0 %1101
          %1105 = vset.pattern.permute.xlu0 0
          %1106 = vperm.xlu0 %1105, %v976
          %v1107 = vpop.permute.xlu0 %1106
          %1110 = vset.pattern.permute.xlu0 0
          %1111 = vperm.xlu0 %1110, %v977
          %v1112 = vpop.permute.xlu0 %1111
          %v1114 = vsel %vm1090, %v1097, 0.0
          %v1115 = vsel %vm1091, %v1102, 0.0
          %v1116 = vsel %vm1092, %v1107, 0.0
          %v1117 = vsel %vm1093, %v1112, 0.0
          %v1118 = vadd.f32 %v1070, %v1114
          %v1119 = vadd.f32 %v1071, %v1115
          %v1120 = vadd.f32 %v1072, %v1116
          %v1121 = vadd.f32 %v1073, %v1117
          %v1122 = vld [vmem:[#allocation8] sm:$0xff]
          %v1123 = vld [vmem:[#allocation8 + $0x8] sm:$0xff]
          %v1124 = vld [vmem:[#allocation8 + $0x10] sm:$0xff]
          %v1125 = vld [vmem:[#allocation8 + $0x18] sm:$0xff]
          %v1126 = vpack.c.bf16 %v1119, %v1118
          %v1127 = vpack.c.bf16 %v1121, %v1120
          %v1128 = vld [vmem:[%s349] sm:$0xf]
          %v1129 = vld [vmem:[%s349 + $0x4] sm:$0xf]
          %v1130 = vld [vmem:[%s349 + $0x8] sm:$0xf]
          %v1131 = vld [vmem:[%s349 + $0xc] sm:$0xf]
          %v1132 = vld [vmem:[%s349 + $0x10] sm:$0xf]
          %v1133 = vld [vmem:[%s349 + $0x14] sm:$0xf]
          %v1134 = vld [vmem:[%s349 + $0x18] sm:$0xf]
          %v1135 = vld [vmem:[%s349 + $0x1c] sm:$0xf]
          %v1136 = vld [vmem:[%s349 + $0x20] sm:$0xf]
          %v1137 = vld [vmem:[%s349 + $0x24] sm:$0xf]
          %v1138 = vld [vmem:[%s349 + $0x28] sm:$0xf]
          %v1139 = vld [vmem:[%s349 + $0x2c] sm:$0xf]
          %v1140 = vld [vmem:[%s349 + $0x30] sm:$0xf]
          %v1141 = vld [vmem:[%s349 + $0x34] sm:$0xf]
          %v1142 = vld [vmem:[%s349 + $0x38] sm:$0xf]
          %v1143 = vld [vmem:[%s349 + $0x3c] sm:$0xf]
          %v1160 = vunpack.c.l.b16 %v1128
          %v1161 = vunpack.c.l.b16 %v1129
          %v1162 = vunpack.c.l.b16 %v1130
          %v1163 = vunpack.c.l.b16 %v1131
          %v1164 = vunpack.c.l.b16 %v1132
          %v1165 = vunpack.c.l.b16 %v1133
          %v1166 = vunpack.c.l.b16 %v1134
          %v1167 = vunpack.c.l.b16 %v1135
          %v1168 = vunpack.c.l.b16 %v1136
          %v1169 = vunpack.c.l.b16 %v1137
          %v1170 = vunpack.c.l.b16 %v1138
          %v1171 = vunpack.c.l.b16 %v1139
          %v1172 = vunpack.c.l.b16 %v1140
          %v1173 = vunpack.c.l.b16 %v1141
          %v1174 = vunpack.c.l.b16 %v1142
          %v1175 = vunpack.c.l.b16 %v1143
          %v1176 = vpack.c.b16 %v1161, %v1160
          %v1177 = vpack.c.b16 %v1163, %v1162
          %v1178 = vpack.c.b16 %v1165, %v1164
          %v1179 = vpack.c.b16 %v1167, %v1166
          %v1180 = vpack.c.b16 %v1169, %v1168
          %v1181 = vpack.c.b16 %v1171, %v1170
          %v1182 = vpack.c.b16 %v1173, %v1172
          %v1183 = vpack.c.b16 %v1175, %v1174
          %1192 = vmatprep.subr.bf16.mxu0 0
          %1193 = vmatpush1.bf16.msra.mxu0 %v1176
          %1194 = vmatprep.subr.bf16.mxu0 0
          %1195 = vmatpush1.bf16.msra.mxu0 %v1177
          %1196 = vmatprep.subr.bf16.mxu0 0
          %1197 = vmatpush1.bf16.msra.mxu0 %v1178
          %1198 = vmatprep.subr.bf16.mxu0 0
          %1199 = vmatpush1.bf16.msra.mxu0 %v1179
          %1200 = vmatprep.subr.bf16.mxu0 0
          %1201 = vmatpush1.bf16.msra.mxu0 %v1180
          %1202 = vmatprep.subr.bf16.mxu0 0
          %1203 = vmatpush1.bf16.msra.mxu0 %v1181
          %1204 = vmatprep.subr.bf16.mxu0 0
          %1205 = vmatpush1.bf16.msra.mxu0 %v1182
          %1206 = vmatprep.subr.bf16.mxu0 0
          %1207 = vmatpush1.bf16.msra.mxu0 %v1183
          %1208 = vmatprep.subr.bf16.mxu0 0
          %1209 = vmatpush1.bf16.msra.mxu0 0
          %1210 = vmatprep.subr.bf16.mxu0 0
          %1211 = vmatpush1.bf16.msra.mxu0 0
          %1212 = vmatprep.subr.bf16.mxu0 0
          %1213 = vmatpush1.bf16.msra.mxu0 0
          %1214 = vmatprep.subr.bf16.mxu0 0
          %1215 = vmatpush1.bf16.msra.mxu0 0
          %1216 = vmatprep.subr.bf16.mxu0 0
          %1217 = vmatpush1.bf16.msra.mxu0 0
          %1218 = vmatprep.subr.bf16.mxu0 0
          %1219 = vmatpush1.bf16.msra.mxu0 0
          %1220 = vmatprep.subr.bf16.mxu0 0
          %1221 = vmatpush1.bf16.msra.mxu0 0
          %1222 = vmatprep.subr.bf16.mxu0 0
          %1223 = vmatpush1.bf16.msra.mxu0 0
          %1224 = vmatprep.mubr.bf16.mxu0 0
          %1225 = vmatmul.mubr.bf16.gmra.mrb[0].mxu0 %v1126
          %v1226 = vpop.f32.mrb[0].mxu0
          %v1227 = vadd.f32 0.0, %v1226
          %v1228 = vpop.f32.mrb[0].mxu0
          %v1229 = vpop.f32.mrb[0].mxu0
          %v1230 = vadd.f32 0.0, %v1229
          %v1231 = vpop.f32.mrb[0].mxu0
          %1232 = vmatprep.mubr.bf16.mxu0 0
          %1233 = vmatmul.mubr.bf16.gmra.mrb[0].mxu0 %v1127
          %v1234 = vpop.f32.mrb[0].mxu0
          %v1235 = vadd.f32 0.0, %v1234
          %v1236 = vpop.f32.mrb[0].mxu0
          %v1237 = vpop.f32.mrb[0].mxu0
          %v1238 = vadd.f32 0.0, %v1237
          %v1239 = vpop.f32.mrb[0].mxu0
          %1240 = vdwg.mxu0
          %v1241 = vadd.f32 %v1122, %v1227
          %v1242 = vadd.f32 %v1123, %v1230
          %v1243 = vadd.f32 %v1124, %v1235
          %v1244 = vadd.f32 %v1125, %v1238
          %1245 = vst [vmem:[#allocation8] sm:$0xff] %v1241
          %1246 = vst [vmem:[#allocation8 + $0x8] sm:$0xff] %v1242
          %1247 = vst [vmem:[#allocation8 + $0x10] sm:$0xff] %v1243
          %1248 = vst [vmem:[#allocation8 + $0x18] sm:$0xff] %v1244
        $region56: #{tpu_custom_call.1} parent=39 // pred_fallthru
          _
        // Predicated region
        $region57: #{tpu_custom_call.1} parent=39 // pred_check
          %p1249 = pneg %p804
        $region58: #{tpu_custom_call.1} parent=39 // pred_check_branch
          %1251 = sbr.rel (%p1249) target = $region60
        $region59: #{tpu_custom_call.1} parent=39 // pred_region
          %v1252 = vld [vmem:[#allocation8] sm:$0xff]
          %v1253 = vld [vmem:[#allocation8 + $0x8] sm:$0xff]
          %v1254 = vld [vmem:[#allocation8 + $0x10] sm:$0xff]
          %v1255 = vld [vmem:[#allocation8 + $0x18] sm:$0xff]
          %1256 = vst [vmem:[#allocation9] sm:$0xff] %v1252
          %1257 = vst [vmem:[#allocation9 + $0x8] sm:$0xff] %v1253
          %1258 = vst [vmem:[#allocation9 + $0x10] sm:$0xff] %v1254
          %1259 = vst [vmem:[#allocation9 + $0x18] sm:$0xff] %v1255
        $region60: #{tpu_custom_call.1} parent=39 // pred_fallthru
          _
        // Predicated region
        $region61: #{tpu_custom_call.1} parent=39 // pred_check
          %p1260 = pneg %p191
        $region62: #{tpu_custom_call.1} parent=39 // pred_check_branch
          %1262 = sbr.rel (%p1260) target = $region64
        $region63: #{tpu_custom_call.1} parent=39 // pred_region
          %s1263 = smul.u32 4, %s21
          %s1265 = ssub.s32 512, 512
          %1266 = vsyncadd [#allocation10], %s1265
          %s1267 = smul.addr %s1263, 128
          %s1268 = scalar_lea.hbm %s5, %s1267
          %s1269 = sshll.u32 [#allocation9], 4
          %s1270 = int_to_ptr.vmem [resolvable:$true] %s1269
          %1275 = dma.vmem_to_hbm [thread:$0]  %s1270, 512, %s1268, [#allocation10], 128, 128, 8
        $region64: #{tpu_custom_call.1} parent=39 // pred_fallthru
          _
        // Predicated region
        $region65: #{tpu_custom_call.1} parent=39 // pred_check
          %p1276 = pneg %p191
        $region66: #{tpu_custom_call.1} parent=39 // pred_check_branch
          %1278 = sbr.rel (%p1276) target = $region68
        $region67: #{tpu_custom_call.1} parent=39 // pred_region
          %1279 = dma.done [#allocation10], 512
        $region68: #{tpu_custom_call.1} parent=39 // pred_fallthru
          _
      $region40: #{tpu_custom_call.1} parent=5 // pred_fallthru
        _
      %p1280 = scmp.le.s32.totalorder 2, %s12
      // Predicated region
      $region69: #{tpu_custom_call.1} parent=5 // pred_check
        %p1281 = pneg %p1280
      $region70: #{tpu_custom_call.1} parent=5 // pred_check_branch
        %1283 = sbr.rel (%p1281) target = $region72
      $region71: #{tpu_custom_call.1} parent=5 // pred_region
        %s1284 = ssub.s32 %s12, 2
      $region72: #{tpu_custom_call.1} parent=5 // pred_fallthru
        _
    $region6: #{tpu_custom_call.1} parent=1 // loop_footer
      %s16 = sadd.s32 1, %s12
    $region7: #{tpu_custom_call.1} parent=1 // loop_footer_branch
      %11 = sbr.rel target = $region3
    $region8: #{tpu_custom_call.1} parent=1 // loop_exit
      _
    %1285 = vsyncpa [#allocation10], 1
    %s1286 = scalar_lea.sflag [#allocation10], 1
    %1287 = vsyncpa %s1286, 1

</llo_original>
